<compile_context>
chip_gen: v6e
topology: v6e:2x2x1
jax: 0.10.0
libtpu: 0.0.40
codegen_flags: <defaults>
</compile_context>

<pallas_src>
import math

import jax
import jax.numpy as jnp
from jax.experimental import pallas as pl
from jax.experimental.pallas import tpu as pltpu


_HIDDEN = (128, 256, 512, 1024)
_LANE = 128
_SUBLANE_BF16 = 16


def _round_up(x, m):
    return int(-(-int(x) // int(m)) * int(m))


# --------------------------------------------------------------------------
# Kernel: fused 5-layer MLP (4x Linear+ReLU, Linear+Tanh) on one batch tile.
# --------------------------------------------------------------------------
def _generator_kernel(z_ref,
                      w1_ref, b1_ref,
                      w2_ref, b2_ref,
                      w3_ref, b3_ref,
                      w4_ref, b4_ref,
                      w5_ref, b5_ref,
                      out_ref):

    def dense(h, w_ref, b_ref):
        # h is bf16, weights bf16 -> native MXU path, f32 accumulation,
        # f32 bias add.
        return (jnp.dot(h, w_ref[...], preferred_element_type=jnp.float32)
                + b_ref[...])

    h = z_ref[...]  # bf16 input tile
    h = jnp.maximum(dense(h, w1_ref, b1_ref), 0.0).astype(jnp.bfloat16)
    h = jnp.maximum(dense(h, w2_ref, b2_ref), 0.0).astype(jnp.bfloat16)
    h = jnp.maximum(dense(h, w3_ref, b3_ref), 0.0).astype(jnp.bfloat16)
    h = jnp.maximum(dense(h, w4_ref, b4_ref), 0.0).astype(jnp.bfloat16)
    # TODO(synk): for very large img_shape (img_pad >= ~8K), stream w5 from HBM
    # with a manual double buffer instead of keeping it fully VMEM-resident.
    out_ref[...] = jnp.tanh(dense(h, w5_ref, b5_ref))


# --------------------------------------------------------------------------
# One-time parameter preparation (pad to lane-dense shapes, cast to bf16).
# --------------------------------------------------------------------------
def prepare_params(params, z_dim, *, weight_dtype=jnp.bfloat16):
    """params = [(w1, b1), ..., (w5, b5)], w_i: (in, out), b_i: (1, out)."""
    img_shape = params[-1][0].shape[1]
    z_pad = _round_up(max(z_dim, 1), _LANE)
    img_pad = _round_up(img_shape, _LANE)
    dims = [z_pad] + list(_HIDDEN) + [img_pad]

    flat = []
    for li, (w, b) in enumerate(params):
        in_p, out_p = dims[li], dims[li + 1]
        wp = jnp.pad(jnp.asarray(w, jnp.float32),
                     ((0, in_p - w.shape[0]), (0, out_p - w.shape[1])))
        bp = jnp.pad(jnp.asarray(b, jnp.float32),
                     ((0, 0), (0, out_p - b.shape[1])))
        flat.append(wp.astype(weight_dtype))   # bf16 weights
        flat.append(bp)                        # f32 biases
    meta = dict(z_dim=int(z_dim), img_shape=int(img_shape),
                z_pad=z_pad, img_pad=img_pad, dims=tuple(dims))
    return tuple(jax.device_put(a) for a in flat), meta


# --------------------------------------------------------------------------
# Tiling / VMEM helpers.
# --------------------------------------------------------------------------
def _vmem_cap_bytes():
    """Generation-aware VMEM limit cap, leaving headroom for compiler scratch."""
    phys = 64 << 20  # conservative default (v7x per-TC physical VMEM)
    try:
        phys = int(pltpu.get_tpu_info().vmem_capacity_bytes)
    except Exception:
        pass
    if phys >= (128 << 20):          # v5e / v6e
        return 100 << 20
    return max(min(phys - (8 << 20), 56 << 20), 32 << 20)   # v7x-class


def _choose_tiling(batch, *, max_tile=256, sublane=_SUBLANE_BF16):
    """Adaptive batch tiling: minimal padding, megacore-friendly grid."""
    n_tiles = max(1, -(-batch // max_tile))
    # v7x has 2 TensorCores sharing the ("parallel",) grid axis: prefer >= 2
    # grid steps once the batch is big enough to keep both MXUs busy.
    if n_tiles == 1 and batch >= 2 * max(sublane, 128):
        n_tiles = 2
    tile_m = _round_up(-(-batch // n_tiles), sublane)
    b_pad = n_tiles * tile_m
    return tile_m, b_pad, n_tiles


# --------------------------------------------------------------------------
# Forward wrapper.
# --------------------------------------------------------------------------
def generator_forward(z, prepared, meta):
    flat = prepared
    batch = z.shape[0]
    z_dim, img_shape = meta["z_dim"], meta["img_shape"]
    z_pad, img_pad = meta["z_pad"], meta["img_pad"]
    dims = meta["dims"]

    tile_m, b_pad, n_tiles = _choose_tiling(batch)

    # bf16 input tile (halves per-step z DMA bytes); batch padded to the grid.
    zp = jnp.pad(jnp.asarray(z, jnp.float32).astype(jnp.bfloat16),
                 ((0, b_pad - batch), (0, z_pad - z_dim)))

    # Grid-invariant operands: constant index_map + single buffer.
    single = pl.Buffered(1)

    def const_spec(shape):
        try:
            return pl.BlockSpec(shape, lambda i: (0, 0), pipeline_mode=single)
        except TypeError:            # older jax: no pipeline_mode kwarg
            return pl.BlockSpec(shape, lambda i: (0, 0))

    in_specs = [pl.BlockSpec((tile_m, z_pad), lambda i: (i, 0))]
    for li in range(5):
        in_p, out_p = dims[li], dims[li + 1]
        in_specs.append(const_spec((in_p, out_p)))   # weight, bf16, VMEM-resident
        in_specs.append(const_spec((1, out_p)))      # bias,   f32,  VMEM-resident
    out_specs = pl.BlockSpec((tile_m, img_pad), lambda i: (i, 0))

    # Advisory cost estimate so XLA can schedule around the custom call.
    flops = 2 * b_pad * sum(dims[i] * dims[i + 1] for i in range(5))
    w_bytes = sum(int(a.size) * a.dtype.itemsize for a in flat)
    cost = pl.CostEstimate(
        flops=flops,
        transcendentals=b_pad * img_pad,
        bytes_accessed=w_bytes + b_pad * z_pad * 2 + b_pad * img_pad * 4,
    )

    # VMEM budget: single-buffered weights/biases + double-buffered z/out tiles
    # + activation temporaries (f32 accumulator + bf16 copy), plus headroom,
    # clamped to a generation-aware cap.
    act_bytes = 2 * tile_m * max(_HIDDEN) * (4 + 2)
    io_bytes = 2 * tile_m * (z_pad * 2 + img_pad * 4)
    budget = w_bytes + act_bytes + io_bytes + (8 << 20)
    vmem_limit = int(min(max(budget, 32 << 20), _vmem_cap_bytes()))

    out = pl.pallas_call(
        _generator_kernel,
        out_shape=jax.ShapeDtypeStruct((b_pad, img_pad), jnp.float32),
        grid_spec=pltpu.PrefetchScalarGridSpec(
            num_scalar_prefetch=0,
            grid=(n_tiles,),
            in_specs=in_specs,
            out_specs=out_specs,
        ),
        compiler_params=pltpu.CompilerParams(
            dimension_semantics=("parallel",),
            vmem_limit_bytes=vmem_limit,
        ),
        cost_estimate=cost,
    )(zp, *flat)

    return out[:batch, :img_shape]


# --------------------------------------------------------------------------
# Init + pure-JAX reference.
# --------------------------------------------------------------------------
def init_params(key, z_dim, img_shape):
    """Deterministic init mimicking nn.Linear default (uniform +/- 1/sqrt(fan_in))."""
    dims = [z_dim] + list(_HIDDEN) + [img_shape]
    params = []
    for i in range(len(dims) - 1):
        fan_in, fan_out = dims[i], dims[i + 1]
        key, kw, kb = jax.random.split(key, 3)
        bound = 1.0 / math.sqrt(fan_in)
        w = jax.random.uniform(kw, (fan_in, fan_out), jnp.float32, -bound, bound)
        b = jax.random.uniform(kb, (1, fan_out), jnp.float32, -bound, bound)
        params.append((w, b))
    return params


def reference_forward(z, params, *, activation_dtype=jnp.float32,
                      weight_dtype=jnp.float32):
    """Pure-JAX reference.  bf16 dtypes mirror the kernel's math."""
    h = jnp.asarray(z, jnp.float32).astype(activation_dtype)
    for i, (w, b) in enumerate(params):
        y = (jnp.dot(h.astype(weight_dtype), w.astype(weight_dtype),
                     preferred_element_type=jnp.float32)
             + b.astype(jnp.float32))
        if i < len(params) - 1:
            h = jnp.maximum(y, 0.0).astype(activation_dtype)
        else:
            h = jnp.tanh(y)
    return h


if __name__ == "__main__":
    key = jax.random.PRNGKey(0)
    batch, z_dim, img_shape = 8, 32, 64

    key, kz = jax.random.split(key)
    z = jax.random.normal(kz, (batch, z_dim), jnp.float32)
    params = init_params(key, z_dim, img_shape)

    # One-time pad + bf16 cast of the weights (done outside the forward pass).
    prepared, meta = prepare_params(params, z_dim)

    out = jax.block_until_ready(generator_forward(z, prepared, meta))
    assert out.shape == (batch, img_shape), out.shape

    # Tight check against a reference that mirrors the kernel's bf16/f32 math.
    ref_bf16 = reference_forward(z, params, activation_dtype=jnp.bfloat16,
                                 weight_dtype=jnp.bfloat16)
    assert jnp.allclose(out, ref_bf16, atol=2e-3, rtol=2e-3), \
        "mismatch vs bf16-matched reference"

    # Loose check against the original full-f32 PyTorch semantics.
    ref_f32 = reference_forward(z, params)
    assert jnp.allclose(out, ref_f32, atol=5e-2, rtol=5e-2), \
        "mismatch vs f32 reference"

    print("KERNEL_OK")
</pallas_src>

<mosaic_0001>
module attributes {stable_mosaic.version = 11 : i64} {
  func.func @_generator_kernel(%arg0: i32, %arg1: memref<16x128xbf16, #tpu.memory_space<vmem>>, %arg2: memref<128x128xbf16, #tpu.memory_space<vmem>>, %arg3: memref<1x128xf32, #tpu.memory_space<vmem>>, %arg4: memref<128x256xbf16, #tpu.memory_space<vmem>>, %arg5: memref<1x256xf32, #tpu.memory_space<vmem>>, %arg6: memref<256x512xbf16, #tpu.memory_space<vmem>>, %arg7: memref<1x512xf32, #tpu.memory_space<vmem>>, %arg8: memref<512x1024xbf16, #tpu.memory_space<vmem>>, %arg9: memref<1x1024xf32, #tpu.memory_space<vmem>>, %arg10: memref<1024x128xbf16, #tpu.memory_space<vmem>>, %arg11: memref<1x128xf32, #tpu.memory_space<vmem>>, %arg12: memref<16x128xf32, #tpu.memory_space<vmem>>) attributes {dimension_semantics = [#tpu.dimension_semantics<parallel>], iteration_bounds = array<i64: 1>, scalar_prefetch = 0 : i64, scratch_operands = 0 : i64, tpu.core_type = #tpu.core_type<tc>, window_params = [{transform_indices = @transform_0, window_bounds = array<i64: 16, 128>}, {pipeline_mode = #tpu.pipeline_mode<synchronous>, transform_indices = @transform_1, window_bounds = array<i64: 128, 128>}, {pipeline_mode = #tpu.pipeline_mode<synchronous>, transform_indices = @transform_2, window_bounds = array<i64: 1, 128>}, {pipeline_mode = #tpu.pipeline_mode<synchronous>, transform_indices = @transform_3, window_bounds = array<i64: 128, 256>}, {pipeline_mode = #tpu.pipeline_mode<synchronous>, transform_indices = @transform_4, window_bounds = array<i64: 1, 256>}, {pipeline_mode = #tpu.pipeline_mode<synchronous>, transform_indices = @transform_5, window_bounds = array<i64: 256, 512>}, {pipeline_mode = #tpu.pipeline_mode<synchronous>, transform_indices = @transform_6, window_bounds = array<i64: 1, 512>}, {pipeline_mode = #tpu.pipeline_mode<synchronous>, transform_indices = @transform_7, window_bounds = array<i64: 512, 1024>}, {pipeline_mode = #tpu.pipeline_mode<synchronous>, transform_indices = @transform_8, window_bounds = array<i64: 1, 1024>}, {pipeline_mode = #tpu.pipeline_mode<synchronous>, transform_indices = @transform_9, window_bounds = array<i64: 1024, 128>}, {pipeline_mode = #tpu.pipeline_mode<synchronous>, transform_indices = @transform_10, window_bounds = array<i64: 1, 128>}, {transform_indices = @transform_11, window_bounds = array<i64: 16, 128>}]} {
    %c0 = arith.constant 0 : index
    %c0_0 = arith.constant 0 : index
    %0 = vector.load %arg1[%c0, %c0_0] : memref<16x128xbf16, #tpu.memory_space<vmem>>, vector<16x128xbf16>
    %c0_1 = arith.constant 0 : index
    %c0_2 = arith.constant 0 : index
    %1 = vector.load %arg2[%c0_1, %c0_2] : memref<128x128xbf16, #tpu.memory_space<vmem>>, vector<128x128xbf16>
    %cst = arith.constant dense<0.000000e+00> : vector<16x128xf32>
    %2 = tpu.matmul %0, %1, %cst {dimension_numbers = #tpu.dot_dimension_numbers<[1], [0], [0], [1], [0, 0, 1, 1], [], []>} : vector<16x128xbf16>, vector<128x128xbf16>, vector<16x128xf32> -> vector<16x128xf32>
    %c0_3 = arith.constant 0 : index
    %c0_4 = arith.constant 0 : index
    %3 = vector.load %arg3[%c0_3, %c0_4] : memref<1x128xf32, #tpu.memory_space<vmem>>, vector<1x128xf32>
    %4 = vector.broadcast %3 : vector<1x128xf32> to vector<16x128xf32>
    %5 = arith.addf %2, %4 : vector<16x128xf32>
    %cst_5 = arith.constant 0.000000e+00 : f32
    %6 = vector.broadcast %cst_5 : f32 to vector<16x128xf32>
    %7 = arith.maximumf %5, %6 : vector<16x128xf32>
    %8 = arith.truncf %7 : vector<16x128xf32> to vector<16x128xbf16>
    %c0_6 = arith.constant 0 : index
    %c0_7 = arith.constant 0 : index
    %9 = vector.load %arg4[%c0_6, %c0_7] : memref<128x256xbf16, #tpu.memory_space<vmem>>, vector<128x256xbf16>
    %cst_8 = arith.constant dense<0.000000e+00> : vector<16x256xf32>
    %10 = tpu.matmul %8, %9, %cst_8 {dimension_numbers = #tpu.dot_dimension_numbers<[1], [0], [0], [1], [0, 0, 1, 1], [], []>} : vector<16x128xbf16>, vector<128x256xbf16>, vector<16x256xf32> -> vector<16x256xf32>
    %c0_9 = arith.constant 0 : index
    %c0_10 = arith.constant 0 : index
    %11 = vector.load %arg5[%c0_9, %c0_10] : memref<1x256xf32, #tpu.memory_space<vmem>>, vector<1x256xf32>
    %12 = vector.broadcast %11 : vector<1x256xf32> to vector<16x256xf32>
    %13 = arith.addf %10, %12 : vector<16x256xf32>
    %cst_11 = arith.constant 0.000000e+00 : f32
    %14 = vector.broadcast %cst_11 : f32 to vector<16x256xf32>
    %15 = arith.maximumf %13, %14 : vector<16x256xf32>
    %16 = arith.truncf %15 : vector<16x256xf32> to vector<16x256xbf16>
    %c0_12 = arith.constant 0 : index
    %c0_13 = arith.constant 0 : index
    %17 = vector.load %arg6[%c0_12, %c0_13] : memref<256x512xbf16, #tpu.memory_space<vmem>>, vector<256x512xbf16>
    %cst_14 = arith.constant dense<0.000000e+00> : vector<16x512xf32>
    %18 = tpu.matmul %16, %17, %cst_14 {dimension_numbers = #tpu.dot_dimension_numbers<[1], [0], [0], [1], [0, 0, 1, 1], [], []>} : vector<16x256xbf16>, vector<256x512xbf16>, vector<16x512xf32> -> vector<16x512xf32>
    %c0_15 = arith.constant 0 : index
    %c0_16 = arith.constant 0 : index
    %19 = vector.load %arg7[%c0_15, %c0_16] : memref<1x512xf32, #tpu.memory_space<vmem>>, vector<1x512xf32>
    %20 = vector.broadcast %19 : vector<1x512xf32> to vector<16x512xf32>
    %21 = arith.addf %18, %20 : vector<16x512xf32>
    %cst_17 = arith.constant 0.000000e+00 : f32
    %22 = vector.broadcast %cst_17 : f32 to vector<16x512xf32>
    %23 = arith.maximumf %21, %22 : vector<16x512xf32>
    %24 = arith.truncf %23 : vector<16x512xf32> to vector<16x512xbf16>
    %c0_18 = arith.constant 0 : index
    %c0_19 = arith.constant 0 : index
    %25 = vector.load %arg8[%c0_18, %c0_19] : memref<512x1024xbf16, #tpu.memory_space<vmem>>, vector<512x1024xbf16>
    %cst_20 = arith.constant dense<0.000000e+00> : vector<16x1024xf32>
    %26 = tpu.matmul %24, %25, %cst_20 {dimension_numbers = #tpu.dot_dimension_numbers<[1], [0], [0], [1], [0, 0, 1, 1], [], []>} : vector<16x512xbf16>, vector<512x1024xbf16>, vector<16x1024xf32> -> vector<16x1024xf32>
    %c0_21 = arith.constant 0 : index
    %c0_22 = arith.constant 0 : index
    %27 = vector.load %arg9[%c0_21, %c0_22] : memref<1x1024xf32, #tpu.memory_space<vmem>>, vector<1x1024xf32>
    %28 = vector.broadcast %27 : vector<1x1024xf32> to vector<16x1024xf32>
    %29 = arith.addf %26, %28 : vector<16x1024xf32>
    %cst_23 = arith.constant 0.000000e+00 : f32
    %30 = vector.broadcast %cst_23 : f32 to vector<16x1024xf32>
    %31 = arith.maximumf %29, %30 : vector<16x1024xf32>
    %32 = arith.truncf %31 : vector<16x1024xf32> to vector<16x1024xbf16>
    %c0_24 = arith.constant 0 : index
    %c0_25 = arith.constant 0 : index
    %33 = vector.load %arg10[%c0_24, %c0_25] : memref<1024x128xbf16, #tpu.memory_space<vmem>>, vector<1024x128xbf16>
    %cst_26 = arith.constant dense<0.000000e+00> : vector<16x128xf32>
    %34 = tpu.matmul %32, %33, %cst_26 {dimension_numbers = #tpu.dot_dimension_numbers<[1], [0], [0], [1], [0, 0, 1, 1], [], []>} : vector<16x1024xbf16>, vector<1024x128xbf16>, vector<16x128xf32> -> vector<16x128xf32>
    %c0_27 = arith.constant 0 : index
    %c0_28 = arith.constant 0 : index
    %35 = vector.load %arg11[%c0_27, %c0_28] : memref<1x128xf32, #tpu.memory_space<vmem>>, vector<1x128xf32>
    %36 = vector.broadcast %35 : vector<1x128xf32> to vector<16x128xf32>
    %37 = arith.addf %34, %36 : vector<16x128xf32>
    %38 = math.tanh %37 : vector<16x128xf32>
    %c0_29 = arith.constant 0 : index
    %c0_30 = arith.constant 0 : index
    %39 = vector.load %arg12[%c0_29, %c0_30] : memref<16x128xf32, #tpu.memory_space<vmem>>, vector<16x128xf32>
    tpu.vector_store %arg12[%c0_29, %c0_30], %38 {strides = array<i32>} : memref<16x128xf32, #tpu.memory_space<vmem>>, vector<16x128xf32>,
    return
  }
  func.func @transform_0(%arg0: i32) -> (i32, i32) {
    %c0_i32 = arith.constant 0 : i32
    %c0_i32_0 = arith.constant 0 : i32
    return %arg0, %c0_i32 : i32, i32
  }
  func.func @transform_1(%arg0: i32) -> (i32, i32) {
    %c0_i32 = arith.constant 0 : i32
    %c0_i32_0 = arith.constant 0 : i32
    %c0_i32_1 = arith.constant 0 : i32
    return %c0_i32, %c0_i32_0 : i32, i32
  }
  func.func @transform_2(%arg0: i32) -> (i32, i32) {
    %c0_i32 = arith.constant 0 : i32
    %c0_i32_0 = arith.constant 0 : i32
    %c0_i32_1 = arith.constant 0 : i32
    return %c0_i32, %c0_i32_0 : i32, i32
  }
  func.func @transform_3(%arg0: i32) -> (i32, i32) {
    %c0_i32 = arith.constant 0 : i32
    %c0_i32_0 = arith.constant 0 : i32
    %c0_i32_1 = arith.constant 0 : i32
    return %c0_i32, %c0_i32_0 : i32, i32
  }
  func.func @transform_4(%arg0: i32) -> (i32, i32) {
    %c0_i32 = arith.constant 0 : i32
    %c0_i32_0 = arith.constant 0 : i32
    %c0_i32_1 = arith.constant 0 : i32
    return %c0_i32, %c0_i32_0 : i32, i32
  }
  func.func @transform_5(%arg0: i32) -> (i32, i32) {
    %c0_i32 = arith.constant 0 : i32
    %c0_i32_0 = arith.constant 0 : i32
    %c0_i32_1 = arith.constant 0 : i32
    return %c0_i32, %c0_i32_0 : i32, i32
  }
  func.func @transform_6(%arg0: i32) -> (i32, i32) {
    %c0_i32 = arith.constant 0 : i32
    %c0_i32_0 = arith.constant 0 : i32
    %c0_i32_1 = arith.constant 0 : i32
    return %c0_i32, %c0_i32_0 : i32, i32
  }
  func.func @transform_7(%arg0: i32) -> (i32, i32) {
    %c0_i32 = arith.constant 0 : i32
    %c0_i32_0 = arith.constant 0 : i32
    %c0_i32_1 = arith.constant 0 : i32
    return %c0_i32, %c0_i32_0 : i32, i32
  }
  func.func @transform_8(%arg0: i32) -> (i32, i32) {
    %c0_i32 = arith.constant 0 : i32
    %c0_i32_0 = arith.constant 0 : i32
    %c0_i32_1 = arith.constant 0 : i32
    return %c0_i32, %c0_i32_0 : i32, i32
  }
  func.func @transform_9(%arg0: i32) -> (i32, i32) {
    %c0_i32 = arith.constant 0 : i32
    %c0_i32_0 = arith.constant 0 : i32
    %c0_i32_1 = arith.constant 0 : i32
    return %c0_i32, %c0_i32_0 : i32, i32
  }
  func.func @transform_10(%arg0: i32) -> (i32, i32) {
    %c0_i32 = arith.constant 0 : i32
    %c0_i32_0 = arith.constant 0 : i32
    %c0_i32_1 = arith.constant 0 : i32
    return %c0_i32, %c0_i32_0 : i32, i32
  }
  func.func @transform_11(%arg0: i32) -> (i32, i32) {
    %c0_i32 = arith.constant 0 : i32
    %c0_i32_0 = arith.constant 0 : i32
    return %arg0, %c0_i32 : i32, i32
  }
}

</mosaic_0001>

<llo_original>
// kernel: tpu_custom_call.1
$region0: #{tpu_custom_call.1}
  #allocation0 [shape = 'u32[]', space=smem, size = 0x4, offset = 0x4, fixed_abs, tag = 'smem constant byte address 0x4 - core index']
  #allocation1 [shape = 'u32[144,128]{1,0:T(1,128)}', space=vmem, size = 0x12000, scoped, tag = 'internal scratch']
  %s0 = inlined_call_operand.hbm [shape: bf16[16,128], index: 0, kind: input, shape index: {}]
  %s1 = inlined_call_operand.hbm [shape: bf16[128,128], index: 1, kind: input, shape index: {}]
  %s2 = inlined_call_operand.hbm [shape: f32[1,128], index: 2, kind: input, shape index: {}]
  %s3 = inlined_call_operand.hbm [shape: bf16[128,256], index: 3, kind: input, shape index: {}]
  %s4 = inlined_call_operand.vmem [shape: f32[1,256], index: 4, kind: input, shape index: {}]
  %s5 = inlined_call_operand.hbm [shape: bf16[256,512], index: 5, kind: input, shape index: {}]
  %s6 = inlined_call_operand.vmem [shape: f32[1,512], index: 6, kind: input, shape index: {}]
  %s7 = inlined_call_operand.hbm [shape: bf16[512,1024], index: 7, kind: input, shape index: {}]
  %s8 = inlined_call_operand.vmem [shape: f32[1,1024], index: 8, kind: input, shape index: {}]
  %s9 = inlined_call_operand.hbm [shape: bf16[1024,128], index: 9, kind: input, shape index: {}]
  %s10 = inlined_call_operand.vmem [shape: f32[1,128], index: 10, kind: input, shape index: {}]
  %s11 = inlined_call_operand.hbm [shape: f32[16,128], index: 11, kind: output, shape index: {}]
  %s12 = sld [smem:[#allocation0]]
  $region82: #{tpu_custom_call.1} parent=0
    _
  %s14 = ssub.s32 1, %s12
  %s15 = scalar_select 0, %s14, %s12
  $region1: #{tpu_custom_call.1} parent=0
    #allocation2 [shape = 'u8[4096]{0}', space=vmem, size = 0x1000, scoped, tag = 'input window, operand 0, single buffered']
    #allocation3 [shape = 's32[1]{0}', space=sflag, size = 0x4, scoped, tag = 'scoped memory for tpu_custom_call.1']
    #allocation4 [shape = 's32[1]{0}', space=sflag, size = 0x4, scoped, tag = 'scoped memory for tpu_custom_call.1']
    #allocation5 [shape = 'u8[32768]{0}', space=vmem, size = 0x8000, scoped, tag = 'input window, operand 1, single buffered']
    #allocation6 [shape = 's32[1]{0}', space=sflag, size = 0x4, scoped, tag = 'scoped memory for tpu_custom_call.1']
    #allocation7 [shape = 'u8[512]{0}', space=vmem, size = 0x400, scoped, tag = 'input window, operand 2, single buffered']
    #allocation8 [shape = 'u8[65536]{0}', space=vmem, size = 0x10000, scoped, tag = 'input window, operand 3, single buffered']
    #allocation9 [shape = 's32[1]{0}', space=sflag, size = 0x4, scoped, tag = 'scoped memory for tpu_custom_call.1']
    #allocation10 [shape = 'u8[262144]{0}', space=vmem, size = 0x40000, scoped, tag = 'input window, operand 5, single buffered']
    #allocation11 [shape = 'u8[1048576]{0}', space=vmem, size = 0x100000, scoped, tag = 'input window, operand 7, single buffered']
    #allocation12 [shape = 's32[1]{0}', space=sflag, size = 0x4, scoped, tag = 'scoped memory for tpu_custom_call.1']
    #allocation13 [shape = 'u8[262144]{0}', space=vmem, size = 0x40000, scoped, tag = 'input window, operand 9, single buffered']
    #allocation14 [shape = 'u8[8192]{0}', space=vmem, size = 0x2000, scoped, tag = 'output window, operand 0, single buffered']
    %16 = vsyncpa [#allocation3], 0
    %17 = vsyncpa [#allocation6], 0
    %18 = vsyncpa [#allocation9], 0
    %19 = vsyncpa [#allocation12], 0
    %20 = vsyncpa [#allocation4], 0
    // Predicated region
    $region2: #{tpu_custom_call.1} parent=1 // pred_check
      _
    $region3: #{tpu_custom_call.1} parent=1 // pred_check_branch
      %22 = sbr.rel (0) target = $region5
    $region4: #{tpu_custom_call.1} parent=1 // pred_region
      %s24 = ssub.s32 128, 128
      %25 = vsyncadd [#allocation3], %s24
      %s26 = sshll.u32 [#allocation2], 4
      %s27 = int_to_ptr.vmem [resolvable:$true] %s26
      %32 = dma.hbm_to_vmem [thread:$0]  %s0, 128, %s27, [#allocation3], 64, 64, 4
    $region5: #{tpu_custom_call.1} parent=1 // pred_fallthru
      _
    // Predicated region
    $region6: #{tpu_custom_call.1} parent=1 // pred_check
      _
    $region7: #{tpu_custom_call.1} parent=1 // pred_check_branch
      %34 = sbr.rel (0) target = $region9
    $region8: #{tpu_custom_call.1} parent=1 // pred_region
      %s36 = ssub.s32 1024, 1024
      %37 = vsyncadd [#allocation6], %s36
      %s38 = sshll.u32 [#allocation5], 4
      %s39 = int_to_ptr.vmem [resolvable:$true] %s38
      %44 = dma.hbm_to_vmem [thread:$0]  %s1, 1024, %s39, [#allocation6], 64, 64, 4
    $region9: #{tpu_custom_call.1} parent=1 // pred_fallthru
      _
    // Predicated region
    $region10: #{tpu_custom_call.1} parent=1 // pred_check
      _
    $region11: #{tpu_custom_call.1} parent=1 // pred_check_branch
      %46 = sbr.rel (0) target = $region13
    $region12: #{tpu_custom_call.1} parent=1 // pred_region
      %s48 = ssub.s32 16, 16
      %49 = vsyncadd [#allocation6], %s48
      %s51 = sshll.u32 [#allocation7], 4
      %s52 = int_to_ptr.vmem [resolvable:$true] %s51
      %54 = dma.hbm_to_vmem [thread:$0]  %s2, 16, %s52, [#allocation6]
    $region13: #{tpu_custom_call.1} parent=1 // pred_fallthru
      _
    // Predicated region
    $region14: #{tpu_custom_call.1} parent=1 // pred_check
      _
    $region15: #{tpu_custom_call.1} parent=1 // pred_check_branch
      %56 = sbr.rel (0) target = $region17
    $region16: #{tpu_custom_call.1} parent=1 // pred_region
      %s58 = ssub.s32 2048, 2048
      %59 = vsyncadd [#allocation9], %s58
      %s60 = sshll.u32 [#allocation8], 4
      %s61 = int_to_ptr.vmem [resolvable:$true] %s60
      %66 = dma.hbm_to_vmem [thread:$0]  %s3, 2048, %s61, [#allocation9], 128, 128, 8
    $region17: #{tpu_custom_call.1} parent=1 // pred_fallthru
      _
    // Predicated region
    $region18: #{tpu_custom_call.1} parent=1 // pred_check
      _
    $region19: #{tpu_custom_call.1} parent=1 // pred_check_branch
      %68 = sbr.rel (0) target = $region21
    $region20: #{tpu_custom_call.1} parent=1 // pred_region
      _
    $region21: #{tpu_custom_call.1} parent=1 // pred_fallthru
      _
    // Predicated region
    $region22: #{tpu_custom_call.1} parent=1 // pred_check
      _
    $region23: #{tpu_custom_call.1} parent=1 // pred_check_branch
      %70 = sbr.rel (0) target = $region25
    $region24: #{tpu_custom_call.1} parent=1 // pred_region
      %s72 = ssub.s32 8192, 8192
      %73 = vsyncadd [#allocation9], %s72
      %s74 = sshll.u32 [#allocation10], 4
      %s75 = int_to_ptr.vmem [resolvable:$true] %s74
      %80 = dma.hbm_to_vmem [thread:$0]  %s5, 8192, %s75, [#allocation9], 256, 256, 16
    $region25: #{tpu_custom_call.1} parent=1 // pred_fallthru
      _
    // Predicated region
    $region26: #{tpu_custom_call.1} parent=1 // pred_check
      _
    $region27: #{tpu_custom_call.1} parent=1 // pred_check_branch
      %82 = sbr.rel (0) target = $region29
    $region28: #{tpu_custom_call.1} parent=1 // pred_region
      _
    $region29: #{tpu_custom_call.1} parent=1 // pred_fallthru
      _
    // Predicated region
    $region30: #{tpu_custom_call.1} parent=1 // pred_check
      _
    $region31: #{tpu_custom_call.1} parent=1 // pred_check_branch
      %84 = sbr.rel (0) target = $region33
    $region32: #{tpu_custom_call.1} parent=1 // pred_region
      %s86 = ssub.s32 32768, 32768
      %87 = vsyncadd [#allocation12], %s86
      %s88 = sshll.u32 [#allocation11], 4
      %s89 = int_to_ptr.vmem [resolvable:$true] %s88
      %94 = dma.hbm_to_vmem [thread:$0]  %s7, 32768, %s89, [#allocation12], 512, 512, 32
    $region33: #{tpu_custom_call.1} parent=1 // pred_fallthru
      _
    // Predicated region
    $region34: #{tpu_custom_call.1} parent=1 // pred_check
      _
    $region35: #{tpu_custom_call.1} parent=1 // pred_check_branch
      %96 = sbr.rel (0) target = $region37
    $region36: #{tpu_custom_call.1} parent=1 // pred_region
      _
    $region37: #{tpu_custom_call.1} parent=1 // pred_fallthru
      _
    // Predicated region
    $region38: #{tpu_custom_call.1} parent=1 // pred_check
      _
    $region39: #{tpu_custom_call.1} parent=1 // pred_check_branch
      %98 = sbr.rel (0) target = $region41
    $region40: #{tpu_custom_call.1} parent=1 // pred_region
      %s100 = ssub.s32 8192, 8192
      %101 = vsyncadd [#allocation12], %s100
      %s102 = sshll.u32 [#allocation13], 4
      %s103 = int_to_ptr.vmem [resolvable:$true] %s102
      %108 = dma.hbm_to_vmem [thread:$0]  %s9, 8192, %s103, [#allocation12], 64, 64, 4
    $region41: #{tpu_custom_call.1} parent=1 // pred_fallthru
      _
    // Predicated region
    $region42: #{tpu_custom_call.1} parent=1 // pred_check
      _
    $region43: #{tpu_custom_call.1} parent=1 // pred_check_branch
      %110 = sbr.rel (0) target = $region45
    $region44: #{tpu_custom_call.1} parent=1 // pred_region
      _
    $region45: #{tpu_custom_call.1} parent=1 // pred_fallthru
      _
    // Predicated region
    $region46: #{tpu_custom_call.1} parent=1 // pred_check
      _
    $region47: #{tpu_custom_call.1} parent=1 // pred_check_branch
      %112 = sbr.rel (0) target = $region49
    $region48: #{tpu_custom_call.1} parent=1 // pred_region
      %113 = dma.done [#allocation3], 128
    $region49: #{tpu_custom_call.1} parent=1 // pred_fallthru
      _
    // Predicated region
    $region50: #{tpu_custom_call.1} parent=1 // pred_check
      _
    $region51: #{tpu_custom_call.1} parent=1 // pred_check_branch
      %115 = sbr.rel (0) target = $region53
    $region52: #{tpu_custom_call.1} parent=1 // pred_region
      %116 = dma.done [#allocation6], 1024
    $region53: #{tpu_custom_call.1} parent=1 // pred_fallthru
      _
    // Predicated region
    $region54: #{tpu_custom_call.1} parent=1 // pred_check
      _
    $region55: #{tpu_custom_call.1} parent=1 // pred_check_branch
      %118 = sbr.rel (0) target = $region57
    $region56: #{tpu_custom_call.1} parent=1 // pred_region
      %119 = dma.done [#allocation6], 16
    $region57: #{tpu_custom_call.1} parent=1 // pred_fallthru
      _
    // Predicated region
    $region58: #{tpu_custom_call.1} parent=1 // pred_check
      _
    $region59: #{tpu_custom_call.1} parent=1 // pred_check_branch
      %121 = sbr.rel (0) target = $region61
    $region60: #{tpu_custom_call.1} parent=1 // pred_region
      %122 = dma.done [#allocation9], 2048
    $region61: #{tpu_custom_call.1} parent=1 // pred_fallthru
      _
    // Predicated region
    $region62: #{tpu_custom_call.1} parent=1 // pred_check
      _
    $region63: #{tpu_custom_call.1} parent=1 // pred_check_branch
      %124 = sbr.rel (0) target = $region65
    $region64: #{tpu_custom_call.1} parent=1 // pred_region
      %125 = dma.done [#allocation9], 8192
    $region65: #{tpu_custom_call.1} parent=1 // pred_fallthru
      _
    // Predicated region
    $region66: #{tpu_custom_call.1} parent=1 // pred_check
      _
    $region67: #{tpu_custom_call.1} parent=1 // pred_check_branch
      %127 = sbr.rel (0) target = $region69
    $region68: #{tpu_custom_call.1} parent=1 // pred_region
      %128 = dma.done [#allocation12], 32768
    $region69: #{tpu_custom_call.1} parent=1 // pred_fallthru
      _
    // Predicated region
    $region70: #{tpu_custom_call.1} parent=1 // pred_check
      _
    $region71: #{tpu_custom_call.1} parent=1 // pred_check_branch
      %130 = sbr.rel (0) target = $region73
    $region72: #{tpu_custom_call.1} parent=1 // pred_region
      %131 = dma.done [#allocation12], 8192
    $region73: #{tpu_custom_call.1} parent=1 // pred_fallthru
      _
    %v133 = vld [vmem:[#allocation2] sm:$0xf]
    %v134 = vld [vmem:[#allocation2 + $0x4] sm:$0xf]
    %v135 = vld [vmem:[#allocation5] sm:$0xf]
    %v136 = vld [vmem:[#allocation5 + $0x4] sm:$0xf]
    %v137 = vld [vmem:[#allocation5 + $0x8] sm:$0xf]
    %v138 = vld [vmem:[#allocation5 + $0xc] sm:$0xf]
    %v139 = vld [vmem:[#allocation5 + $0x10] sm:$0xf]
    %v140 = vld [vmem:[#allocation5 + $0x14] sm:$0xf]
    %v141 = vld [vmem:[#allocation5 + $0x18] sm:$0xf]
    %v142 = vld [vmem:[#allocation5 + $0x1c] sm:$0xf]
    %v143 = vld [vmem:[#allocation5 + $0x20] sm:$0xf]
    %v144 = vld [vmem:[#allocation5 + $0x24] sm:$0xf]
    %v145 = vld [vmem:[#allocation5 + $0x28] sm:$0xf]
    %v146 = vld [vmem:[#allocation5 + $0x2c] sm:$0xf]
    %v147 = vld [vmem:[#allocation5 + $0x30] sm:$0xf]
    %v148 = vld [vmem:[#allocation5 + $0x34] sm:$0xf]
    %v149 = vld [vmem:[#allocation5 + $0x38] sm:$0xf]
    %v150 = vld [vmem:[#allocation5 + $0x3c] sm:$0xf]
    %v151 = vld [vmem:[#allocation7] sm:$0x1]
    %v153 = vlaneseq
    %v154 = vshrl.u32 %v153, 7
    %v155 = vsub.s32 0, %v154
    %v156 = vrot.slane %v151, %v155
    %v160 = vunpack.c.l.b16 %v133
    %v161 = vunpack.c.l.b16 %v134
    %v162 = vpack.c.b16 %v161, %v160
    %v180 = vunpack.c.l.b16 %v135
    %v181 = vunpack.c.l.b16 %v136
    %v182 = vunpack.c.l.b16 %v137
    %v183 = vunpack.c.l.b16 %v138
    %v184 = vunpack.c.l.b16 %v139
    %v185 = vunpack.c.l.b16 %v140
    %v186 = vunpack.c.l.b16 %v141
    %v187 = vunpack.c.l.b16 %v142
    %v188 = vunpack.c.l.b16 %v143
    %v189 = vunpack.c.l.b16 %v144
    %v190 = vunpack.c.l.b16 %v145
    %v191 = vunpack.c.l.b16 %v146
    %v192 = vunpack.c.l.b16 %v147
    %v193 = vunpack.c.l.b16 %v148
    %v194 = vunpack.c.l.b16 %v149
    %v195 = vunpack.c.l.b16 %v150
    %v196 = vpack.c.b16 %v181, %v180
    %v197 = vpack.c.b16 %v183, %v182
    %v198 = vpack.c.b16 %v185, %v184
    %v199 = vpack.c.b16 %v187, %v186
    %v200 = vpack.c.b16 %v189, %v188
    %v201 = vpack.c.b16 %v191, %v190
    %v202 = vpack.c.b16 %v193, %v192
    %v203 = vpack.c.b16 %v195, %v194
    %212 = vmatprep.subr.bf16.mxu0 0
    %213 = vmatpush1.bf16.msra.mxu0 %v203
    %214 = vmatprep.subr.bf16.mxu0 0
    %215 = vmatpush1.bf16.msra.mxu0 %v202
    %216 = vmatprep.subr.bf16.mxu0 0
    %217 = vmatpush1.bf16.msra.mxu0 %v201
    %218 = vmatprep.subr.bf16.mxu0 0
    %219 = vmatpush1.bf16.msra.mxu0 %v200
    %220 = vmatprep.subr.bf16.mxu0 0
    %221 = vmatpush1.bf16.msra.mxu0 %v199
    %222 = vmatprep.subr.bf16.mxu0 0
    %223 = vmatpush1.bf16.msra.mxu0 %v198
    %224 = vmatprep.subr.bf16.mxu0 0
    %225 = vmatpush1.bf16.msra.mxu0 %v197
    %226 = vmatprep.subr.bf16.mxu0 0
    %227 = vmatpush1.bf16.msra.mxu0 %v196
    %228 = vmatprep.subr.bf16.mxu0 0
    %229 = vmatpush2.bf16.msra.mxu0 0
    %230 = vmatprep.subr.bf16.mxu0 0
    %231 = vmatpush2.bf16.msra.mxu0 0
    %232 = vmatprep.subr.bf16.mxu0 0
    %233 = vmatpush2.bf16.msra.mxu0 0
    %234 = vmatprep.subr.bf16.mxu0 0
    %235 = vmatpush2.bf16.msra.mxu0 0
    %236 = vmatprep.subr.bf16.mxu0 0
    %237 = vmatpush2.bf16.msra.mxu0 0
    %238 = vmatprep.subr.bf16.mxu0 0
    %239 = vmatpush2.bf16.msra.mxu0 0
    %240 = vmatprep.subr.bf16.mxu0 0
    %241 = vmatpush2.bf16.msra.mxu0 0
    %242 = vmatprep.subr.bf16.mxu0 0
    %243 = vmatpush2.bf16.msra.mxu0 0
    %244 = vmatprep.mubr.bf16.mxu0 0
    %245 = vmatmul.mubr.bf16.gmra.mxu0 %v162
    %v246 = vpop.f32.mrf.mxu0
    %v247 = vadd.f32 %v156, %v246
    %v248 = vpop.f32.mrf.mxu0
    %v249 = vpop.f32.mrf.mxu0
    %v250 = vadd.f32 %v156, %v249
    %v251 = vpop.f32.mrf.mxu0
    %252 = vdwg.mxu0
    %v253 = vmax.f32 %v247, 0.0
    %v254 = vmax.f32 %v250, 0.0
    %v255 = vpack.c.bf16 %v254, %v253
    %v256 = vld [vmem:[#allocation8] sm:$0xff]
    %v257 = vld [vmem:[#allocation8 + $0x8] sm:$0xff]
    %v258 = vld [vmem:[#allocation8 + $0x10] sm:$0xff]
    %v259 = vld [vmem:[#allocation8 + $0x18] sm:$0xff]
    %v260 = vld [vmem:[#allocation8 + $0x20] sm:$0xff]
    %v261 = vld [vmem:[#allocation8 + $0x28] sm:$0xff]
    %v262 = vld [vmem:[#allocation8 + $0x30] sm:$0xff]
    %v263 = vld [vmem:[#allocation8 + $0x38] sm:$0xff]
    %v264 = vld [vmem:[#allocation8 + $0x40] sm:$0xff]
    %v265 = vld [vmem:[#allocation8 + $0x48] sm:$0xff]
    %v266 = vld [vmem:[#allocation8 + $0x50] sm:$0xff]
    %v267 = vld [vmem:[#allocation8 + $0x58] sm:$0xff]
    %v268 = vld [vmem:[#allocation8 + $0x60] sm:$0xff]
    %v269 = vld [vmem:[#allocation8 + $0x68] sm:$0xff]
    %v270 = vld [vmem:[#allocation8 + $0x70] sm:$0xff]
    %v271 = vld [vmem:[#allocation8 + $0x78] sm:$0xff]
    %v272 = vld [vmem:[%s4] sm:$0x3]
    %v274 = vlaneseq
    %v275 = vshrl.u32 %v274, 7
    %v276 = vsub.s32 0, %v275
    %v277 = vrot.slane %v272, %v276
    %v278 = vlaneseq
    %v279 = vshrl.u32 %v278, 7
    %v280 = vsub.s32 1, %v279
    %v281 = vrot.slane %v272, %v280
    %v300 = vunpack.c.l.b16 %v256
    %v301 = vunpack.c.h.b16 %v256
    %v302 = vunpack.c.l.b16 %v257
    %v303 = vunpack.c.h.b16 %v257
    %v304 = vunpack.c.l.b16 %v258
    %v305 = vunpack.c.h.b16 %v258
    %v306 = vunpack.c.l.b16 %v259
    %v307 = vunpack.c.h.b16 %v259
    %v308 = vunpack.c.l.b16 %v260
    %v309 = vunpack.c.h.b16 %v260
    %v310 = vunpack.c.l.b16 %v261
    %v311 = vunpack.c.h.b16 %v261
    %v312 = vunpack.c.l.b16 %v262
    %v313 = vunpack.c.h.b16 %v262
    %v314 = vunpack.c.l.b16 %v263
    %v315 = vunpack.c.h.b16 %v263
    %v316 = vunpack.c.l.b16 %v264
    %v317 = vunpack.c.h.b16 %v264
    %v318 = vunpack.c.l.b16 %v265
    %v319 = vunpack.c.h.b16 %v265
    %v320 = vunpack.c.l.b16 %v266
    %v321 = vunpack.c.h.b16 %v266
    %v322 = vunpack.c.l.b16 %v267
    %v323 = vunpack.c.h.b16 %v267
    %v324 = vunpack.c.l.b16 %v268
    %v325 = vunpack.c.h.b16 %v268
    %v326 = vunpack.c.l.b16 %v269
    %v327 = vunpack.c.h.b16 %v269
    %v328 = vunpack.c.l.b16 %v270
    %v329 = vunpack.c.h.b16 %v270
    %v330 = vunpack.c.l.b16 %v271
    %v331 = vunpack.c.h.b16 %v271
    %v332 = vpack.c.b16 %v302, %v300
    %v333 = vpack.c.b16 %v303, %v301
    %v334 = vpack.c.b16 %v306, %v304
    %v335 = vpack.c.b16 %v307, %v305
    %v336 = vpack.c.b16 %v310, %v308
    %v337 = vpack.c.b16 %v311, %v309
    %v338 = vpack.c.b16 %v314, %v312
    %v339 = vpack.c.b16 %v315, %v313
    %v340 = vpack.c.b16 %v318, %v316
    %v341 = vpack.c.b16 %v319, %v317
    %v342 = vpack.c.b16 %v322, %v320
    %v343 = vpack.c.b16 %v323, %v321
    %v344 = vpack.c.b16 %v326, %v324
    %v345 = vpack.c.b16 %v327, %v325
    %v346 = vpack.c.b16 %v330, %v328
    %v347 = vpack.c.b16 %v331, %v329
    %364 = vmatprep.subr.bf16.mxu0 %v347
    %365 = vmatpush1.bf16.msra.mxu0 %v346
    %366 = vmatprep.subr.bf16.mxu0 %v345
    %367 = vmatpush1.bf16.msra.mxu0 %v344
    %368 = vmatprep.subr.bf16.mxu0 %v343
    %369 = vmatpush1.bf16.msra.mxu0 %v342
    %370 = vmatprep.subr.bf16.mxu0 %v341
    %371 = vmatpush1.bf16.msra.mxu0 %v340
    %372 = vmatprep.subr.bf16.mxu0 %v339
    %373 = vmatpush1.bf16.msra.mxu0 %v338
    %374 = vmatprep.subr.bf16.mxu0 %v337
    %375 = vmatpush1.bf16.msra.mxu0 %v336
    %376 = vmatprep.subr.bf16.mxu0 %v335
    %377 = vmatpush1.bf16.msra.mxu0 %v334
    %378 = vmatprep.subr.bf16.mxu0 %v333
    %379 = vmatpush1.bf16.msra.mxu0 %v332
    %380 = vmatprep.subr.bf16.mxu0 0
    %381 = vmatpush2.bf16.msra.mxu0 0
    %382 = vmatprep.subr.bf16.mxu0 0
    %383 = vmatpush2.bf16.msra.mxu0 0
    %384 = vmatprep.subr.bf16.mxu0 0
    %385 = vmatpush2.bf16.msra.mxu0 0
    %386 = vmatprep.subr.bf16.mxu0 0
    %387 = vmatpush2.bf16.msra.mxu0 0
    %388 = vmatprep.subr.bf16.mxu0 0
    %389 = vmatpush2.bf16.msra.mxu0 0
    %390 = vmatprep.subr.bf16.mxu0 0
    %391 = vmatpush2.bf16.msra.mxu0 0
    %392 = vmatprep.subr.bf16.mxu0 0
    %393 = vmatpush2.bf16.msra.mxu0 0
    %394 = vmatprep.subr.bf16.mxu0 0
    %395 = vmatpush2.bf16.msra.mxu0 0
    %396 = vmatprep.mubr.bf16.mxu0 0
    %397 = vmatmul.mubr.bf16.gmra.mxu0 %v255
    %v398 = vpop.f32.mrf.mxu0
    %v399 = vadd.f32 %v277, %v398
    %v400 = vpop.f32.mrf.mxu0
    %v401 = vadd.f32 %v281, %v400
    %v402 = vpop.f32.mrf.mxu0
    %v403 = vadd.f32 %v277, %v402
    %v404 = vpop.f32.mrf.mxu0
    %v405 = vadd.f32 %v281, %v404
    %406 = vdwg.mxu0
    %v407 = vmax.f32 %v399, 0.0
    %v408 = vmax.f32 %v401, 0.0
    %v409 = vmax.f32 %v403, 0.0
    %v410 = vmax.f32 %v405, 0.0
    %v411 = vpack.c.bf16 %v409, %v407
    %v412 = vpack.c.bf16 %v410, %v408
    %v413 = vld [vmem:[#allocation10] sm:$0xff]
    %v414 = vld [vmem:[#allocation10 + $0x8] sm:$0xff]
    %v415 = vld [vmem:[#allocation10 + $0x10] sm:$0xff]
    %v416 = vld [vmem:[#allocation10 + $0x18] sm:$0xff]
    %v417 = vld [vmem:[#allocation10 + $0x20] sm:$0xff]
    %v418 = vld [vmem:[#allocation10 + $0x28] sm:$0xff]
    %v419 = vld [vmem:[#allocation10 + $0x30] sm:$0xff]
    %v420 = vld [vmem:[#allocation10 + $0x38] sm:$0xff]
    %v421 = vld [vmem:[#allocation10 + $0x40] sm:$0xff]
    %v422 = vld [vmem:[#allocation10 + $0x48] sm:$0xff]
    %v423 = vld [vmem:[#allocation10 + $0x50] sm:$0xff]
    %v424 = vld [vmem:[#allocation10 + $0x58] sm:$0xff]
    %v425 = vld [vmem:[#allocation10 + $0x60] sm:$0xff]
    %v426 = vld [vmem:[#allocation10 + $0x68] sm:$0xff]
    %v427 = vld [vmem:[#allocation10 + $0x70] sm:$0xff]
    %v428 = vld [vmem:[#allocation10 + $0x78] sm:$0xff]
    %v429 = vld [vmem:[#allocation10 + $0x80] sm:$0xff]
    %v430 = vld [vmem:[#allocation10 + $0x88] sm:$0xff]
    %v431 = vld [vmem:[#allocation10 + $0x90] sm:$0xff]
    %v432 = vld [vmem:[#allocation10 + $0x98] sm:$0xff]
    %v433 = vld [vmem:[#allocation10 + $0xa0] sm:$0xff]
    %v434 = vld [vmem:[#allocation10 + $0xa8] sm:$0xff]
    %v435 = vld [vmem:[#allocation10 + $0xb0] sm:$0xff]
    %v436 = vld [vmem:[#allocation10 + $0xb8] sm:$0xff]
    %v437 = vld [vmem:[#allocation10 + $0xc0] sm:$0xff]
    %v438 = vld [vmem:[#allocation10 + $0xc8] sm:$0xff]
    %v439 = vld [vmem:[#allocation10 + $0xd0] sm:$0xff]
    %v440 = vld [vmem:[#allocation10 + $0xd8] sm:$0xff]
    %v441 = vld [vmem:[#allocation10 + $0xe0] sm:$0xff]
    %v442 = vld [vmem:[#allocation10 + $0xe8] sm:$0xff]
    %v443 = vld [vmem:[#allocation10 + $0xf0] sm:$0xff]
    %v444 = vld [vmem:[#allocation10 + $0xf8] sm:$0xff]
    %v445 = vld [vmem:[#allocation10 + $0x100] sm:$0xff]
    %v446 = vld [vmem:[#allocation10 + $0x108] sm:$0xff]
    %v447 = vld [vmem:[#allocation10 + $0x110] sm:$0xff]
    %v448 = vld [vmem:[#allocation10 + $0x118] sm:$0xff]
    %v449 = vld [vmem:[#allocation10 + $0x120] sm:$0xff]
    %v450 = vld [vmem:[#allocation10 + $0x128] sm:$0xff]
    %v451 = vld [vmem:[#allocation10 + $0x130] sm:$0xff]
    %v452 = vld [vmem:[#allocation10 + $0x138] sm:$0xff]
    %v453 = vld [vmem:[#allocation10 + $0x140] sm:$0xff]
    %v454 = vld [vmem:[#allocation10 + $0x148] sm:$0xff]
    %v455 = vld [vmem:[#allocation10 + $0x150] sm:$0xff]
    %v456 = vld [vmem:[#allocation10 + $0x158] sm:$0xff]
    %v457 = vld [vmem:[#allocation10 + $0x160] sm:$0xff]
    %v458 = vld [vmem:[#allocation10 + $0x168] sm:$0xff]
    %v459 = vld [vmem:[#allocation10 + $0x170] sm:$0xff]
    %v460 = vld [vmem:[#allocation10 + $0x178] sm:$0xff]
    %v461 = vld [vmem:[#allocation10 + $0x180] sm:$0xff]
    %v462 = vld [vmem:[#allocation10 + $0x188] sm:$0xff]
    %v463 = vld [vmem:[#allocation10 + $0x190] sm:$0xff]
    %v464 = vld [vmem:[#allocation10 + $0x198] sm:$0xff]
    %v465 = vld [vmem:[#allocation10 + $0x1a0] sm:$0xff]
    %v466 = vld [vmem:[#allocation10 + $0x1a8] sm:$0xff]
    %v467 = vld [vmem:[#allocation10 + $0x1b0] sm:$0xff]
    %v468 = vld [vmem:[#allocation10 + $0x1b8] sm:$0xff]
    %v469 = vld [vmem:[#allocation10 + $0x1c0] sm:$0xff]
    %v470 = vld [vmem:[#allocation10 + $0x1c8] sm:$0xff]
    %v471 = vld [vmem:[#allocation10 + $0x1d0] sm:$0xff]
    %v472 = vld [vmem:[#allocation10 + $0x1d8] sm:$0xff]
    %v473 = vld [vmem:[#allocation10 + $0x1e0] sm:$0xff]
    %v474 = vld [vmem:[#allocation10 + $0x1e8] sm:$0xff]
    %v475 = vld [vmem:[#allocation10 + $0x1f0] sm:$0xff]
    %v476 = vld [vmem:[#allocation10 + $0x1f8] sm:$0xff]
    %v477 = vld [vmem:[%s6] sm:$0xf]
    %v479 = vlaneseq
    %v480 = vshrl.u32 %v479, 7
    %v481 = vsub.s32 0, %v480
    %v482 = vrot.slane %v477, %v481
    %v483 = vlaneseq
    %v484 = vshrl.u32 %v483, 7
    %v485 = vsub.s32 1, %v484
    %v486 = vrot.slane %v477, %v485
    %v487 = vlaneseq
    %v488 = vshrl.u32 %v487, 7
    %v489 = vsub.s32 2, %v488
    %v490 = vrot.slane %v477, %v489
    %v491 = vlaneseq
    %v492 = vshrl.u32 %v491, 7
    %v493 = vsub.s32 3, %v492
    %v494 = vrot.slane %v477, %v493
    %v563 = vunpack.c.l.b16 %v413
    %v564 = vunpack.c.h.b16 %v413
    %v565 = vunpack.c.l.b16 %v414
    %v566 = vunpack.c.h.b16 %v414
    %v567 = vunpack.c.l.b16 %v415
    %v568 = vunpack.c.h.b16 %v415
    %v569 = vunpack.c.l.b16 %v416
    %v570 = vunpack.c.h.b16 %v416
    %v571 = vunpack.c.l.b16 %v417
    %v572 = vunpack.c.h.b16 %v417
    %v573 = vunpack.c.l.b16 %v418
    %v574 = vunpack.c.h.b16 %v418
    %v575 = vunpack.c.l.b16 %v419
    %v576 = vunpack.c.h.b16 %v419
    %v577 = vunpack.c.l.b16 %v420
    %v578 = vunpack.c.h.b16 %v420
    %v579 = vunpack.c.l.b16 %v421
    %v580 = vunpack.c.h.b16 %v421
    %v581 = vunpack.c.l.b16 %v422
    %v582 = vunpack.c.h.b16 %v422
    %v583 = vunpack.c.l.b16 %v423
    %v584 = vunpack.c.h.b16 %v423
    %v585 = vunpack.c.l.b16 %v424
    %v586 = vunpack.c.h.b16 %v424
    %v587 = vunpack.c.l.b16 %v425
    %v588 = vunpack.c.h.b16 %v425
    %v589 = vunpack.c.l.b16 %v426
    %v590 = vunpack.c.h.b16 %v426
    %v591 = vunpack.c.l.b16 %v427
    %v592 = vunpack.c.h.b16 %v427
    %v593 = vunpack.c.l.b16 %v428
    %v594 = vunpack.c.h.b16 %v428
    %v595 = vunpack.c.l.b16 %v429
    %v596 = vunpack.c.h.b16 %v429
    %v597 = vunpack.c.l.b16 %v430
    %v598 = vunpack.c.h.b16 %v430
    %v599 = vunpack.c.l.b16 %v431
    %v600 = vunpack.c.h.b16 %v431
    %v601 = vunpack.c.l.b16 %v432
    %v602 = vunpack.c.h.b16 %v432
    %v603 = vunpack.c.l.b16 %v433
    %v604 = vunpack.c.h.b16 %v433
    %v605 = vunpack.c.l.b16 %v434
    %v606 = vunpack.c.h.b16 %v434
    %v607 = vunpack.c.l.b16 %v435
    %v608 = vunpack.c.h.b16 %v435
    %v609 = vunpack.c.l.b16 %v436
    %v610 = vunpack.c.h.b16 %v436
    %v611 = vunpack.c.l.b16 %v437
    %v612 = vunpack.c.h.b16 %v437
    %v613 = vunpack.c.l.b16 %v438
    %v614 = vunpack.c.h.b16 %v438
    %v615 = vunpack.c.l.b16 %v439
    %v616 = vunpack.c.h.b16 %v439
    %v617 = vunpack.c.l.b16 %v440
    %v618 = vunpack.c.h.b16 %v440
    %v619 = vunpack.c.l.b16 %v441
    %v620 = vunpack.c.h.b16 %v441
    %v621 = vunpack.c.l.b16 %v442
    %v622 = vunpack.c.h.b16 %v442
    %v623 = vunpack.c.l.b16 %v443
    %v624 = vunpack.c.h.b16 %v443
    %v625 = vunpack.c.l.b16 %v444
    %v626 = vunpack.c.h.b16 %v444
    %v627 = vunpack.c.l.b16 %v445
    %v628 = vunpack.c.h.b16 %v445
    %v629 = vunpack.c.l.b16 %v446
    %v630 = vunpack.c.h.b16 %v446
    %v631 = vunpack.c.l.b16 %v447
    %v632 = vunpack.c.h.b16 %v447
    %v633 = vunpack.c.l.b16 %v448
    %v634 = vunpack.c.h.b16 %v448
    %v635 = vunpack.c.l.b16 %v449
    %v636 = vunpack.c.h.b16 %v449
    %v637 = vunpack.c.l.b16 %v450
    %v638 = vunpack.c.h.b16 %v450
    %v639 = vunpack.c.l.b16 %v451
    %v640 = vunpack.c.h.b16 %v451
    %v641 = vunpack.c.l.b16 %v452
    %v642 = vunpack.c.h.b16 %v452
    %v643 = vunpack.c.l.b16 %v453
    %v644 = vunpack.c.h.b16 %v453
    %v645 = vunpack.c.l.b16 %v454
    %v646 = vunpack.c.h.b16 %v454
    %v647 = vunpack.c.l.b16 %v455
    %v648 = vunpack.c.h.b16 %v455
    %v649 = vunpack.c.l.b16 %v456
    %v650 = vunpack.c.h.b16 %v456
    %v651 = vunpack.c.l.b16 %v457
    %v652 = vunpack.c.h.b16 %v457
    %v653 = vunpack.c.l.b16 %v458
    %v654 = vunpack.c.h.b16 %v458
    %v655 = vunpack.c.l.b16 %v459
    %v656 = vunpack.c.h.b16 %v459
    %v657 = vunpack.c.l.b16 %v460
    %v658 = vunpack.c.h.b16 %v460
    %v659 = vunpack.c.l.b16 %v461
    %v660 = vunpack.c.h.b16 %v461
    %v661 = vunpack.c.l.b16 %v462
    %v662 = vunpack.c.h.b16 %v462
    %v663 = vunpack.c.l.b16 %v463
    %v664 = vunpack.c.h.b16 %v463
    %v665 = vunpack.c.l.b16 %v464
    %v666 = vunpack.c.h.b16 %v464
    %v667 = vunpack.c.l.b16 %v465
    %v668 = vunpack.c.h.b16 %v465
    %v669 = vunpack.c.l.b16 %v466
    %v670 = vunpack.c.h.b16 %v466
    %v671 = vunpack.c.l.b16 %v467
    %v672 = vunpack.c.h.b16 %v467
    %v673 = vunpack.c.l.b16 %v468
    %v674 = vunpack.c.h.b16 %v468
    %v675 = vunpack.c.l.b16 %v469
    %v676 = vunpack.c.h.b16 %v469
    %v677 = vunpack.c.l.b16 %v470
    %v678 = vunpack.c.h.b16 %v470
    %v679 = vunpack.c.l.b16 %v471
    %v680 = vunpack.c.h.b16 %v471
    %v681 = vunpack.c.l.b16 %v472
    %v682 = vunpack.c.h.b16 %v472
    %v683 = vunpack.c.l.b16 %v473
    %v684 = vunpack.c.h.b16 %v473
    %v685 = vunpack.c.l.b16 %v474
    %v686 = vunpack.c.h.b16 %v474
    %v687 = vunpack.c.l.b16 %v475
    %v688 = vunpack.c.h.b16 %v475
    %v689 = vunpack.c.l.b16 %v476
    %v690 = vunpack.c.h.b16 %v476
    %v691 = vpack.c.b16 %v567, %v563
    %v692 = vpack.c.b16 %v568, %v564
    %v693 = vpack.c.b16 %v569, %v565
    %v694 = vpack.c.b16 %v570, %v566
    %v695 = vpack.c.b16 %v575, %v571
    %v696 = vpack.c.b16 %v576, %v572
    %v697 = vpack.c.b16 %v577, %v573
    %v698 = vpack.c.b16 %v578, %v574
    %v699 = vpack.c.b16 %v583, %v579
    %v700 = vpack.c.b16 %v584, %v580
    %v701 = vpack.c.b16 %v585, %v581
    %v702 = vpack.c.b16 %v586, %v582
    %v703 = vpack.c.b16 %v591, %v587
    %v704 = vpack.c.b16 %v592, %v588
    %v705 = vpack.c.b16 %v593, %v589
    %v706 = vpack.c.b16 %v594, %v590
    %v707 = vpack.c.b16 %v599, %v595
    %v708 = vpack.c.b16 %v600, %v596
    %v709 = vpack.c.b16 %v601, %v597
    %v710 = vpack.c.b16 %v602, %v598
    %v711 = vpack.c.b16 %v607, %v603
    %v712 = vpack.c.b16 %v608, %v604
    %v713 = vpack.c.b16 %v609, %v605
    %v714 = vpack.c.b16 %v610, %v606
    %v715 = vpack.c.b16 %v615, %v611
    %v716 = vpack.c.b16 %v616, %v612
    %v717 = vpack.c.b16 %v617, %v613
    %v718 = vpack.c.b16 %v618, %v614
    %v719 = vpack.c.b16 %v623, %v619
    %v720 = vpack.c.b16 %v624, %v620
    %v721 = vpack.c.b16 %v625, %v621
    %v722 = vpack.c.b16 %v626, %v622
    %v723 = vpack.c.b16 %v631, %v627
    %v724 = vpack.c.b16 %v632, %v628
    %v725 = vpack.c.b16 %v633, %v629
    %v726 = vpack.c.b16 %v634, %v630
    %v727 = vpack.c.b16 %v639, %v635
    %v728 = vpack.c.b16 %v640, %v636
    %v729 = vpack.c.b16 %v641, %v637
    %v730 = vpack.c.b16 %v642, %v638
    %v731 = vpack.c.b16 %v647, %v643
    %v732 = vpack.c.b16 %v648, %v644
    %v733 = vpack.c.b16 %v649, %v645
    %v734 = vpack.c.b16 %v650, %v646
    %v735 = vpack.c.b16 %v655, %v651
    %v736 = vpack.c.b16 %v656, %v652
    %v737 = vpack.c.b16 %v657, %v653
    %v738 = vpack.c.b16 %v658, %v654
    %v739 = vpack.c.b16 %v663, %v659
    %v740 = vpack.c.b16 %v664, %v660
    %v741 = vpack.c.b16 %v665, %v661
    %v742 = vpack.c.b16 %v666, %v662
    %v743 = vpack.c.b16 %v671, %v667
    %v744 = vpack.c.b16 %v672, %v668
    %v745 = vpack.c.b16 %v673, %v669
    %v746 = vpack.c.b16 %v674, %v670
    %v747 = vpack.c.b16 %v679, %v675
    %v748 = vpack.c.b16 %v680, %v676
    %v749 = vpack.c.b16 %v681, %v677
    %v750 = vpack.c.b16 %v682, %v678
    %v751 = vpack.c.b16 %v687, %v683
    %v752 = vpack.c.b16 %v688, %v684
    %v753 = vpack.c.b16 %v689, %v685
    %v754 = vpack.c.b16 %v690, %v686
    %819 = vmatprep.subr.bf16.mxu0 %v720
    %820 = vmatpush1.bf16.msra.mxu0 %v719
    %821 = vmatprep.subr.bf16.mxu0 %v716
    %822 = vmatpush1.bf16.msra.mxu0 %v715
    %823 = vmatprep.subr.bf16.mxu0 %v712
    %824 = vmatpush1.bf16.msra.mxu0 %v711
    %825 = vmatprep.subr.bf16.mxu0 %v708
    %826 = vmatpush1.bf16.msra.mxu0 %v707
    %827 = vmatprep.subr.bf16.mxu0 %v704
    %828 = vmatpush1.bf16.msra.mxu0 %v703
    %829 = vmatprep.subr.bf16.mxu0 %v700
    %830 = vmatpush1.bf16.msra.mxu0 %v699
    %831 = vmatprep.subr.bf16.mxu0 %v696
    %832 = vmatpush1.bf16.msra.mxu0 %v695
    %833 = vmatprep.subr.bf16.mxu0 %v692
    %834 = vmatpush1.bf16.msra.mxu0 %v691
    %835 = vmatprep.subr.bf16.mxu0 %v752
    %836 = vmatpush2.bf16.msra.mxu0 %v751
    %837 = vmatprep.subr.bf16.mxu0 %v748
    %838 = vmatpush2.bf16.msra.mxu0 %v747
    %839 = vmatprep.subr.bf16.mxu0 %v744
    %840 = vmatpush2.bf16.msra.mxu0 %v743
    %841 = vmatprep.subr.bf16.mxu0 %v740
    %842 = vmatpush2.bf16.msra.mxu0 %v739
    %843 = vmatprep.subr.bf16.mxu0 %v736
    %844 = vmatpush2.bf16.msra.mxu0 %v735
    %845 = vmatprep.subr.bf16.mxu0 %v732
    %846 = vmatpush2.bf16.msra.mxu0 %v731
    %847 = vmatprep.subr.bf16.mxu0 %v728
    %848 = vmatpush2.bf16.msra.mxu0 %v727
    %849 = vmatprep.subr.bf16.mxu0 %v724
    %850 = vmatpush2.bf16.msra.mxu0 %v723
    %851 = vmatprep.mubr.bf16.mxu0 %v412
    %852 = vmatmul.mubr.bf16.gmra.mxu0 %v411
    %v853 = vpop.f32.mrf.mxu0
    %v854 = vadd.f32 %v482, %v853
    %v855 = vpop.f32.mrf.mxu0
    %v856 = vadd.f32 %v486, %v855
    %v857 = vpop.f32.mrf.mxu0
    %v858 = vadd.f32 %v482, %v857
    %v859 = vpop.f32.mrf.mxu0
    %v860 = vadd.f32 %v486, %v859
    %861 = vdwg.mxu0
    %862 = vmatprep.subr.bf16.mxu0 %v722
    %863 = vmatpush1.bf16.msra.mxu0 %v721
    %864 = vmatprep.subr.bf16.mxu0 %v718
    %865 = vmatpush1.bf16.msra.mxu0 %v717
    %866 = vmatprep.subr.bf16.mxu0 %v714
    %867 = vmatpush1.bf16.msra.mxu0 %v713
    %868 = vmatprep.subr.bf16.mxu0 %v710
    %869 = vmatpush1.bf16.msra.mxu0 %v709
    %870 = vmatprep.subr.bf16.mxu0 %v706
    %871 = vmatpush1.bf16.msra.mxu0 %v705
    %872 = vmatprep.subr.bf16.mxu0 %v702
    %873 = vmatpush1.bf16.msra.mxu0 %v701
    %874 = vmatprep.subr.bf16.mxu0 %v698
    %875 = vmatpush1.bf16.msra.mxu0 %v697
    %876 = vmatprep.subr.bf16.mxu0 %v694
    %877 = vmatpush1.bf16.msra.mxu0 %v693
    %878 = vmatprep.subr.bf16.mxu0 %v754
    %879 = vmatpush2.bf16.msra.mxu0 %v753
    %880 = vmatprep.subr.bf16.mxu0 %v750
    %881 = vmatpush2.bf16.msra.mxu0 %v749
    %882 = vmatprep.subr.bf16.mxu0 %v746
    %883 = vmatpush2.bf16.msra.mxu0 %v745
    %884 = vmatprep.subr.bf16.mxu0 %v742
    %885 = vmatpush2.bf16.msra.mxu0 %v741
    %886 = vmatprep.subr.bf16.mxu0 %v738
    %887 = vmatpush2.bf16.msra.mxu0 %v737
    %888 = vmatprep.subr.bf16.mxu0 %v734
    %889 = vmatpush2.bf16.msra.mxu0 %v733
    %890 = vmatprep.subr.bf16.mxu0 %v730
    %891 = vmatpush2.bf16.msra.mxu0 %v729
    %892 = vmatprep.subr.bf16.mxu0 %v726
    %893 = vmatpush2.bf16.msra.mxu0 %v725
    %894 = vmatprep.mubr.bf16.mxu0 %v412
    %895 = vmatmul.mubr.bf16.gmra.mxu0 %v411
    %v896 = vpop.f32.mrf.mxu0
    %v897 = vadd.f32 %v490, %v896
    %v898 = vpop.f32.mrf.mxu0
    %v899 = vadd.f32 %v494, %v898
    %v900 = vpop.f32.mrf.mxu0
    %v901 = vadd.f32 %v490, %v900
    %v902 = vpop.f32.mrf.mxu0
    %v903 = vadd.f32 %v494, %v902
    %904 = vdwg.mxu0
    %v905 = vmax.f32 %v854, 0.0
    %v906 = vmax.f32 %v856, 0.0
    %v907 = vmax.f32 %v897, 0.0
    %v908 = vmax.f32 %v899, 0.0
    %v909 = vmax.f32 %v858, 0.0
    %v910 = vmax.f32 %v860, 0.0
    %v911 = vmax.f32 %v901, 0.0
    %v912 = vmax.f32 %v903, 0.0
    %v913 = vpack.c.bf16 %v909, %v905
    %v914 = vpack.c.bf16 %v910, %v906
    %v915 = vpack.c.bf16 %v911, %v907
    %v916 = vpack.c.bf16 %v912, %v908
    %v917 = vld [vmem:[#allocation11] sm:$0xff]
    %v918 = vld [vmem:[#allocation11 + $0x8] sm:$0xff]
    %v919 = vld [vmem:[#allocation11 + $0x10] sm:$0xff]
    %v920 = vld [vmem:[#allocation11 + $0x18] sm:$0xff]
    %v921 = vld [vmem:[#allocation11 + $0x20] sm:$0xff]
    %v922 = vld [vmem:[#allocation11 + $0x28] sm:$0xff]
    %v923 = vld [vmem:[#allocation11 + $0x30] sm:$0xff]
    %v924 = vld [vmem:[#allocation11 + $0x38] sm:$0xff]
    %v925 = vld [vmem:[#allocation11 + $0x40] sm:$0xff]
    %v926 = vld [vmem:[#allocation11 + $0x48] sm:$0xff]
    %v927 = vld [vmem:[#allocation11 + $0x50] sm:$0xff]
    %v928 = vld [vmem:[#allocation11 + $0x58] sm:$0xff]
    %v929 = vld [vmem:[#allocation11 + $0x60] sm:$0xff]
    %v930 = vld [vmem:[#allocation11 + $0x68] sm:$0xff]
    %v931 = vld [vmem:[#allocation11 + $0x70] sm:$0xff]
    %v932 = vld [vmem:[#allocation11 + $0x78] sm:$0xff]
    %v933 = vld [vmem:[#allocation11 + $0x80] sm:$0xff]
    %v934 = vld [vmem:[#allocation11 + $0x88] sm:$0xff]
    %v935 = vld [vmem:[#allocation11 + $0x90] sm:$0xff]
    %v936 = vld [vmem:[#allocation11 + $0x98] sm:$0xff]
    %v937 = vld [vmem:[#allocation11 + $0xa0] sm:$0xff]
    %v938 = vld [vmem:[#allocation11 + $0xa8] sm:$0xff]
    %v939 = vld [vmem:[#allocation11 + $0xb0] sm:$0xff]
    %v940 = vld [vmem:[#allocation11 + $0xb8] sm:$0xff]
    %v941 = vld [vmem:[#allocation11 + $0xc0] sm:$0xff]
    %v942 = vld [vmem:[#allocation11 + $0xc8] sm:$0xff]
    %v943 = vld [vmem:[#allocation11 + $0xd0] sm:$0xff]
    %v944 = vld [vmem:[#allocation11 + $0xd8] sm:$0xff]
    %v945 = vld [vmem:[#allocation11 + $0xe0] sm:$0xff]
    %v946 = vld [vmem:[#allocation11 + $0xe8] sm:$0xff]
    %v947 = vld [vmem:[#allocation11 + $0xf0] sm:$0xff]
    %v948 = vld [vmem:[#allocation11 + $0xf8] sm:$0xff]
    %v949 = vld [vmem:[#allocation11 + $0x100] sm:$0xff]
    %v950 = vld [vmem:[#allocation11 + $0x108] sm:$0xff]
    %v951 = vld [vmem:[#allocation11 + $0x110] sm:$0xff]
    %v952 = vld [vmem:[#allocation11 + $0x118] sm:$0xff]
    %v953 = vld [vmem:[#allocation11 + $0x120] sm:$0xff]
    %v954 = vld [vmem:[#allocation11 + $0x128] sm:$0xff]
    %v955 = vld [vmem:[#allocation11 + $0x130] sm:$0xff]
    %v956 = vld [vmem:[#allocation11 + $0x138] sm:$0xff]
    %v957 = vld [vmem:[#allocation11 + $0x140] sm:$0xff]
    %v958 = vld [vmem:[#allocation11 + $0x148] sm:$0xff]
    %v959 = vld [vmem:[#allocation11 + $0x150] sm:$0xff]
    %v960 = vld [vmem:[#allocation11 + $0x158] sm:$0xff]
    %v961 = vld [vmem:[#allocation11 + $0x160] sm:$0xff]
    %v962 = vld [vmem:[#allocation11 + $0x168] sm:$0xff]
    %v963 = vld [vmem:[#allocation11 + $0x170] sm:$0xff]
    %v964 = vld [vmem:[#allocation11 + $0x178] sm:$0xff]
    %v965 = vld [vmem:[#allocation11 + $0x180] sm:$0xff]
    %v966 = vld [vmem:[#allocation11 + $0x188] sm:$0xff]
    %v967 = vld [vmem:[#allocation11 + $0x190] sm:$0xff]
    %v968 = vld [vmem:[#allocation11 + $0x198] sm:$0xff]
    %v969 = vld [vmem:[#allocation11 + $0x1a0] sm:$0xff]
    %v970 = vld [vmem:[#allocation11 + $0x1a8] sm:$0xff]
    %v971 = vld [vmem:[#allocation11 + $0x1b0] sm:$0xff]
    %v972 = vld [vmem:[#allocation11 + $0x1b8] sm:$0xff]
    %v973 = vld [vmem:[#allocation11 + $0x1c0] sm:$0xff]
    %v974 = vld [vmem:[#allocation11 + $0x1c8] sm:$0xff]
    %v975 = vld [vmem:[#allocation11 + $0x1d0] sm:$0xff]
    %v976 = vld [vmem:[#allocation11 + $0x1d8] sm:$0xff]
    %v977 = vld [vmem:[#allocation11 + $0x1e0] sm:$0xff]
    %v978 = vld [vmem:[#allocation11 + $0x1e8] sm:$0xff]
    %v979 = vld [vmem:[#allocation11 + $0x1f0] sm:$0xff]
    %v980 = vld [vmem:[#allocation11 + $0x1f8] sm:$0xff]
    %v981 = vld [vmem:[#allocation11 + $0x200] sm:$0xff]
    %v982 = vld [vmem:[#allocation11 + $0x208] sm:$0xff]
    %v983 = vld [vmem:[#allocation11 + $0x210] sm:$0xff]
    %v984 = vld [vmem:[#allocation11 + $0x218] sm:$0xff]
    %v985 = vld [vmem:[#allocation11 + $0x220] sm:$0xff]
    %v986 = vld [vmem:[#allocation11 + $0x228] sm:$0xff]
    %v987 = vld [vmem:[#allocation11 + $0x230] sm:$0xff]
    %v988 = vld [vmem:[#allocation11 + $0x238] sm:$0xff]
    %v989 = vld [vmem:[#allocation11 + $0x240] sm:$0xff]
    %v990 = vld [vmem:[#allocation11 + $0x248] sm:$0xff]
    %v991 = vld [vmem:[#allocation11 + $0x250] sm:$0xff]
    %v992 = vld [vmem:[#allocation11 + $0x258] sm:$0xff]
    %v993 = vld [vmem:[#allocation11 + $0x260] sm:$0xff]
    %v994 = vld [vmem:[#allocation11 + $0x268] sm:$0xff]
    %v995 = vld [vmem:[#allocation11 + $0x270] sm:$0xff]
    %v996 = vld [vmem:[#allocation11 + $0x278] sm:$0xff]
    %v997 = vld [vmem:[#allocation11 + $0x280] sm:$0xff]
    %v998 = vld [vmem:[#allocation11 + $0x288] sm:$0xff]
    %v999 = vld [vmem:[#allocation11 + $0x290] sm:$0xff]
    %v1000 = vld [vmem:[#allocation11 + $0x298] sm:$0xff]
    %v1001 = vld [vmem:[#allocation11 + $0x2a0] sm:$0xff]
    %v1002 = vld [vmem:[#allocation11 + $0x2a8] sm:$0xff]
    %v1003 = vld [vmem:[#allocation11 + $0x2b0] sm:$0xff]
    %v1004 = vld [vmem:[#allocation11 + $0x2b8] sm:$0xff]
    %v1005 = vld [vmem:[#allocation11 + $0x2c0] sm:$0xff]
    %v1006 = vld [vmem:[#allocation11 + $0x2c8] sm:$0xff]
    %v1007 = vld [vmem:[#allocation11 + $0x2d0] sm:$0xff]
    %v1008 = vld [vmem:[#allocation11 + $0x2d8] sm:$0xff]
    %v1009 = vld [vmem:[#allocation11 + $0x2e0] sm:$0xff]
    %v1010 = vld [vmem:[#allocation11 + $0x2e8] sm:$0xff]
    %v1011 = vld [vmem:[#allocation11 + $0x2f0] sm:$0xff]
    %v1012 = vld [vmem:[#allocation11 + $0x2f8] sm:$0xff]
    %v1013 = vld [vmem:[#allocation11 + $0x300] sm:$0xff]
    %v1014 = vld [vmem:[#allocation11 + $0x308] sm:$0xff]
    %v1015 = vld [vmem:[#allocation11 + $0x310] sm:$0xff]
    %v1016 = vld [vmem:[#allocation11 + $0x318] sm:$0xff]
    %v1017 = vld [vmem:[#allocation11 + $0x320] sm:$0xff]
    %v1018 = vld [vmem:[#allocation11 + $0x328] sm:$0xff]
    %v1019 = vld [vmem:[#allocation11 + $0x330] sm:$0xff]
    %v1020 = vld [vmem:[#allocation11 + $0x338] sm:$0xff]
    %v1021 = vld [vmem:[#allocation11 + $0x340] sm:$0xff]
    %v1022 = vld [vmem:[#allocation11 + $0x348] sm:$0xff]
    %v1023 = vld [vmem:[#allocation11 + $0x350] sm:$0xff]
    %v1024 = vld [vmem:[#allocation11 + $0x358] sm:$0xff]
    %v1025 = vld [vmem:[#allocation11 + $0x360] sm:$0xff]
    %v1026 = vld [vmem:[#allocation11 + $0x368] sm:$0xff]
    %v1027 = vld [vmem:[#allocation11 + $0x370] sm:$0xff]
    %v1028 = vld [vmem:[#allocation11 + $0x378] sm:$0xff]
    %v1029 = vld [vmem:[#allocation11 + $0x380] sm:$0xff]
    %v1030 = vld [vmem:[#allocation11 + $0x388] sm:$0xff]
    %v1031 = vld [vmem:[#allocation11 + $0x390] sm:$0xff]
    %v1032 = vld [vmem:[#allocation11 + $0x398] sm:$0xff]
    %v1033 = vld [vmem:[#allocation11 + $0x3a0] sm:$0xff]
    %v1034 = vld [vmem:[#allocation11 + $0x3a8] sm:$0xff]
    %v1035 = vld [vmem:[#allocation11 + $0x3b0] sm:$0xff]
    %v1036 = vld [vmem:[#allocation11 + $0x3b8] sm:$0xff]
    %v1037 = vld [vmem:[#allocation11 + $0x3c0] sm:$0xff]
    %v1038 = vld [vmem:[#allocation11 + $0x3c8] sm:$0xff]
    %v1039 = vld [vmem:[#allocation11 + $0x3d0] sm:$0xff]
    %v1040 = vld [vmem:[#allocation11 + $0x3d8] sm:$0xff]
    %v1041 = vld [vmem:[#allocation11 + $0x3e0] sm:$0xff]
    %v1042 = vld [vmem:[#allocation11 + $0x3e8] sm:$0xff]
    %v1043 = vld [vmem:[#allocation11 + $0x3f0] sm:$0xff]
    %v1044 = vld [vmem:[#allocation11 + $0x3f8] sm:$0xff]
    %v1045 = vld [vmem:[#allocation11 + $0x400] sm:$0xff]
    %v1046 = vld [vmem:[#allocation11 + $0x408] sm:$0xff]
    %v1047 = vld [vmem:[#allocation11 + $0x410] sm:$0xff]
    %v1048 = vld [vmem:[#allocation11 + $0x418] sm:$0xff]
    %v1049 = vld [vmem:[#allocation11 + $0x420] sm:$0xff]
    %v1050 = vld [vmem:[#allocation11 + $0x428] sm:$0xff]
    %v1051 = vld [vmem:[#allocation11 + $0x430] sm:$0xff]
    %v1052 = vld [vmem:[#allocation11 + $0x438] sm:$0xff]
    %v1053 = vld [vmem:[#allocation11 + $0x440] sm:$0xff]
    %v1054 = vld [vmem:[#allocation11 + $0x448] sm:$0xff]
    %v1055 = vld [vmem:[#allocation11 + $0x450] sm:$0xff]
    %v1056 = vld [vmem:[#allocation11 + $0x458] sm:$0xff]
    %v1057 = vld [vmem:[#allocation11 + $0x460] sm:$0xff]
    %v1058 = vld [vmem:[#allocation11 + $0x468] sm:$0xff]
    %v1059 = vld [vmem:[#allocation11 + $0x470] sm:$0xff]
    %v1060 = vld [vmem:[#allocation11 + $0x478] sm:$0xff]
    %v1061 = vld [vmem:[#allocation11 + $0x480] sm:$0xff]
    %v1062 = vld [vmem:[#allocation11 + $0x488] sm:$0xff]
    %v1063 = vld [vmem:[#allocation11 + $0x490] sm:$0xff]
    %v1064 = vld [vmem:[#allocation11 + $0x498] sm:$0xff]
    %v1065 = vld [vmem:[#allocation11 + $0x4a0] sm:$0xff]
    %v1066 = vld [vmem:[#allocation11 + $0x4a8] sm:$0xff]
    %v1067 = vld [vmem:[#allocation11 + $0x4b0] sm:$0xff]
    %v1068 = vld [vmem:[#allocation11 + $0x4b8] sm:$0xff]
    %v1069 = vld [vmem:[#allocation11 + $0x4c0] sm:$0xff]
    %v1070 = vld [vmem:[#allocation11 + $0x4c8] sm:$0xff]
    %v1071 = vld [vmem:[#allocation11 + $0x4d0] sm:$0xff]
    %v1072 = vld [vmem:[#allocation11 + $0x4d8] sm:$0xff]
    %v1073 = vld [vmem:[#allocation11 + $0x4e0] sm:$0xff]
    %v1074 = vld [vmem:[#allocation11 + $0x4e8] sm:$0xff]
    %v1075 = vld [vmem:[#allocation11 + $0x4f0] sm:$0xff]
    %v1076 = vld [vmem:[#allocation11 + $0x4f8] sm:$0xff]
    %v1077 = vld [vmem:[#allocation11 + $0x500] sm:$0xff]
    %v1078 = vld [vmem:[#allocation11 + $0x508] sm:$0xff]
    %v1079 = vld [vmem:[#allocation11 + $0x510] sm:$0xff]
    %v1080 = vld [vmem:[#allocation11 + $0x518] sm:$0xff]
    %v1081 = vld [vmem:[#allocation11 + $0x520] sm:$0xff]
    %v1082 = vld [vmem:[#allocation11 + $0x528] sm:$0xff]
    %v1083 = vld [vmem:[#allocation11 + $0x530] sm:$0xff]
    %v1084 = vld [vmem:[#allocation11 + $0x538] sm:$0xff]
    %v1085 = vld [vmem:[#allocation11 + $0x540] sm:$0xff]
    %v1086 = vld [vmem:[#allocation11 + $0x548] sm:$0xff]
    %v1087 = vld [vmem:[#allocation11 + $0x550] sm:$0xff]
    %v1088 = vld [vmem:[#allocation11 + $0x558] sm:$0xff]
    %v1089 = vld [vmem:[#allocation11 + $0x560] sm:$0xff]
    %v1090 = vld [vmem:[#allocation11 + $0x568] sm:$0xff]
    %v1091 = vld [vmem:[#allocation11 + $0x570] sm:$0xff]
    %v1092 = vld [vmem:[#allocation11 + $0x578] sm:$0xff]
    %v1093 = vld [vmem:[#allocation11 + $0x580] sm:$0xff]
    %v1094 = vld [vmem:[#allocation11 + $0x588] sm:$0xff]
    %v1095 = vld [vmem:[#allocation11 + $0x590] sm:$0xff]
    %v1096 = vld [vmem:[#allocation11 + $0x598] sm:$0xff]
    %v1097 = vld [vmem:[#allocation11 + $0x5a0] sm:$0xff]
    %v1098 = vld [vmem:[#allocation11 + $0x5a8] sm:$0xff]
    %v1099 = vld [vmem:[#allocation11 + $0x5b0] sm:$0xff]
    %v1100 = vld [vmem:[#allocation11 + $0x5b8] sm:$0xff]
    %v1101 = vld [vmem:[#allocation11 + $0x5c0] sm:$0xff]
    %v1102 = vld [vmem:[#allocation11 + $0x5c8] sm:$0xff]
    %v1103 = vld [vmem:[#allocation11 + $0x5d0] sm:$0xff]
    %v1104 = vld [vmem:[#allocation11 + $0x5d8] sm:$0xff]
    %v1105 = vld [vmem:[#allocation11 + $0x5e0] sm:$0xff]
    %v1106 = vld [vmem:[#allocation11 + $0x5e8] sm:$0xff]
    %v1107 = vld [vmem:[#allocation11 + $0x5f0] sm:$0xff]
    %v1108 = vld [vmem:[#allocation11 + $0x5f8] sm:$0xff]
    %v1109 = vld [vmem:[#allocation11 + $0x600] sm:$0xff]
    %v1110 = vld [vmem:[#allocation11 + $0x608] sm:$0xff]
    %v1111 = vld [vmem:[#allocation11 + $0x610] sm:$0xff]
    %v1112 = vld [vmem:[#allocation11 + $0x618] sm:$0xff]
    %v1113 = vld [vmem:[#allocation11 + $0x620] sm:$0xff]
    %v1114 = vld [vmem:[#allocation11 + $0x628] sm:$0xff]
    %v1115 = vld [vmem:[#allocation11 + $0x630] sm:$0xff]
    %v1116 = vld [vmem:[#allocation11 + $0x638] sm:$0xff]
    %v1117 = vld [vmem:[#allocation11 + $0x640] sm:$0xff]
    %v1118 = vld [vmem:[#allocation11 + $0x648] sm:$0xff]
    %v1119 = vld [vmem:[#allocation11 + $0x650] sm:$0xff]
    %v1120 = vld [vmem:[#allocation11 + $0x658] sm:$0xff]
    %v1121 = vld [vmem:[#allocation11 + $0x660] sm:$0xff]
    %v1122 = vld [vmem:[#allocation11 + $0x668] sm:$0xff]
    %v1123 = vld [vmem:[#allocation11 + $0x670] sm:$0xff]
    %v1124 = vld [vmem:[#allocation11 + $0x678] sm:$0xff]
    %v1125 = vld [vmem:[#allocation11 + $0x680] sm:$0xff]
    %v1126 = vld [vmem:[#allocation11 + $0x688] sm:$0xff]
    %v1127 = vld [vmem:[#allocation11 + $0x690] sm:$0xff]
    %v1128 = vld [vmem:[#allocation11 + $0x698] sm:$0xff]
    %v1129 = vld [vmem:[#allocation11 + $0x6a0] sm:$0xff]
    %v1130 = vld [vmem:[#allocation11 + $0x6a8] sm:$0xff]
    %v1131 = vld [vmem:[#allocation11 + $0x6b0] sm:$0xff]
    %v1132 = vld [vmem:[#allocation11 + $0x6b8] sm:$0xff]
    %v1133 = vld [vmem:[#allocation11 + $0x6c0] sm:$0xff]
    %v1134 = vld [vmem:[#allocation11 + $0x6c8] sm:$0xff]
    %v1135 = vld [vmem:[#allocation11 + $0x6d0] sm:$0xff]
    %v1136 = vld [vmem:[#allocation11 + $0x6d8] sm:$0xff]
    %v1137 = vld [vmem:[#allocation11 + $0x6e0] sm:$0xff]
    %v1138 = vld [vmem:[#allocation11 + $0x6e8] sm:$0xff]
    %v1139 = vld [vmem:[#allocation11 + $0x6f0] sm:$0xff]
    %v1140 = vld [vmem:[#allocation11 + $0x6f8] sm:$0xff]
    %v1141 = vld [vmem:[#allocation11 + $0x700] sm:$0xff]
    %v1142 = vld [vmem:[#allocation11 + $0x708] sm:$0xff]
    %v1143 = vld [vmem:[#allocation11 + $0x710] sm:$0xff]
    %v1144 = vld [vmem:[#allocation11 + $0x718] sm:$0xff]
    %v1145 = vld [vmem:[#allocation11 + $0x720] sm:$0xff]
    %v1146 = vld [vmem:[#allocation11 + $0x728] sm:$0xff]
    %v1147 = vld [vmem:[#allocation11 + $0x730] sm:$0xff]
    %v1148 = vld [vmem:[#allocation11 + $0x738] sm:$0xff]
    %v1149 = vld [vmem:[#allocation11 + $0x740] sm:$0xff]
    %v1150 = vld [vmem:[#allocation11 + $0x748] sm:$0xff]
    %v1151 = vld [vmem:[#allocation11 + $0x750] sm:$0xff]
    %v1152 = vld [vmem:[#allocation11 + $0x758] sm:$0xff]
    %v1153 = vld [vmem:[#allocation11 + $0x760] sm:$0xff]
    %v1154 = vld [vmem:[#allocation11 + $0x768] sm:$0xff]
    %v1155 = vld [vmem:[#allocation11 + $0x770] sm:$0xff]
    %v1156 = vld [vmem:[#allocation11 + $0x778] sm:$0xff]
    %v1157 = vld [vmem:[#allocation11 + $0x780] sm:$0xff]
    %v1158 = vld [vmem:[#allocation11 + $0x788] sm:$0xff]
    %v1159 = vld [vmem:[#allocation11 + $0x790] sm:$0xff]
    %v1160 = vld [vmem:[#allocation11 + $0x798] sm:$0xff]
    %v1161 = vld [vmem:[#allocation11 + $0x7a0] sm:$0xff]
    %v1162 = vld [vmem:[#allocation11 + $0x7a8] sm:$0xff]
    %v1163 = vld [vmem:[#allocation11 + $0x7b0] sm:$0xff]
    %v1164 = vld [vmem:[#allocation11 + $0x7b8] sm:$0xff]
    %v1165 = vld [vmem:[#allocation11 + $0x7c0] sm:$0xff]
    %v1166 = vld [vmem:[#allocation11 + $0x7c8] sm:$0xff]
    %v1167 = vld [vmem:[#allocation11 + $0x7d0] sm:$0xff]
    %v1168 = vld [vmem:[#allocation11 + $0x7d8] sm:$0xff]
    %v1169 = vld [vmem:[#allocation11 + $0x7e0] sm:$0xff]
    %v1170 = vld [vmem:[#allocation11 + $0x7e8] sm:$0xff]
    %v1171 = vld [vmem:[#allocation11 + $0x7f0] sm:$0xff]
    %v1172 = vld [vmem:[#allocation11 + $0x7f8] sm:$0xff]
    %v1173 = vld [vmem:[%s8] sm:$0xff]
    %v1175 = vlaneseq
    %v1176 = vshrl.u32 %v1175, 7
    %v1177 = vsub.s32 0, %v1176
    %v1178 = vrot.slane %v1173, %v1177
    %v1179 = vlaneseq
    %v1180 = vshrl.u32 %v1179, 7
    %v1181 = vsub.s32 1, %v1180
    %v1182 = vrot.slane %v1173, %v1181
    %v1183 = vlaneseq
    %v1184 = vshrl.u32 %v1183, 7
    %v1185 = vsub.s32 2, %v1184
    %v1186 = vrot.slane %v1173, %v1185
    %v1187 = vlaneseq
    %v1188 = vshrl.u32 %v1187, 7
    %v1189 = vsub.s32 3, %v1188
    %v1190 = vrot.slane %v1173, %v1189
    %v1191 = vlaneseq
    %v1192 = vshrl.u32 %v1191, 7
    %v1193 = vsub.s32 4, %v1192
    %v1194 = vrot.slane %v1173, %v1193
    %v1195 = vlaneseq
    %v1196 = vshrl.u32 %v1195, 7
    %v1197 = vsub.s32 5, %v1196
    %v1198 = vrot.slane %v1173, %v1197
    %v1199 = vlaneseq
    %v1200 = vshrl.u32 %v1199, 7
    %v1201 = vsub.s32 6, %v1200
    %v1202 = vrot.slane %v1173, %v1201
    %v1203 = vlaneseq
    %v1204 = vshrl.u32 %v1203, 7
    %v1205 = vsub.s32 7, %v1204
    %v1206 = vrot.slane %v1173, %v1205
    %v1471 = vunpack.c.l.b16 %v917
    %v1472 = vunpack.c.h.b16 %v917
    %v1473 = vunpack.c.l.b16 %v918
    %v1474 = vunpack.c.h.b16 %v918
    %v1475 = vunpack.c.l.b16 %v919
    %v1476 = vunpack.c.h.b16 %v919
    %v1477 = vunpack.c.l.b16 %v920
    %v1478 = vunpack.c.h.b16 %v920
    %v1479 = vunpack.c.l.b16 %v921
    %v1480 = vunpack.c.h.b16 %v921
    %v1481 = vunpack.c.l.b16 %v922
    %v1482 = vunpack.c.h.b16 %v922
    %v1483 = vunpack.c.l.b16 %v923
    %v1484 = vunpack.c.h.b16 %v923
    %v1485 = vunpack.c.l.b16 %v924
    %v1486 = vunpack.c.h.b16 %v924
    %v1487 = vunpack.c.l.b16 %v925
    %v1488 = vunpack.c.h.b16 %v925
    %v1489 = vunpack.c.l.b16 %v926
    %v1490 = vunpack.c.h.b16 %v926
    %v1491 = vunpack.c.l.b16 %v927
    %v1492 = vunpack.c.h.b16 %v927
    %v1493 = vunpack.c.l.b16 %v928
    %v1494 = vunpack.c.h.b16 %v928
    %v1495 = vunpack.c.l.b16 %v929
    %v1496 = vunpack.c.h.b16 %v929
    %v1497 = vunpack.c.l.b16 %v930
    %v1498 = vunpack.c.h.b16 %v930
    %v1499 = vunpack.c.l.b16 %v931
    %v1500 = vunpack.c.h.b16 %v931
    %v1501 = vunpack.c.l.b16 %v932
    %v1502 = vunpack.c.h.b16 %v932
    %v1503 = vunpack.c.l.b16 %v933
    %v1504 = vunpack.c.h.b16 %v933
    %v1505 = vunpack.c.l.b16 %v934
    %v1506 = vunpack.c.h.b16 %v934
    %v1507 = vunpack.c.l.b16 %v935
    %v1508 = vunpack.c.h.b16 %v935
    %v1509 = vunpack.c.l.b16 %v936
    %v1510 = vunpack.c.h.b16 %v936
    %v1511 = vunpack.c.l.b16 %v937
    %v1512 = vunpack.c.h.b16 %v937
    %v1513 = vunpack.c.l.b16 %v938
    %v1514 = vunpack.c.h.b16 %v938
    %v1515 = vunpack.c.l.b16 %v939
    %v1516 = vunpack.c.h.b16 %v939
    %v1517 = vunpack.c.l.b16 %v940
    %v1518 = vunpack.c.h.b16 %v940
    %v1519 = vunpack.c.l.b16 %v941
    %v1520 = vunpack.c.h.b16 %v941
    %v1521 = vunpack.c.l.b16 %v942
    %v1522 = vunpack.c.h.b16 %v942
    %v1523 = vunpack.c.l.b16 %v943
    %v1524 = vunpack.c.h.b16 %v943
    %v1525 = vunpack.c.l.b16 %v944
    %v1526 = vunpack.c.h.b16 %v944
    %v1527 = vunpack.c.l.b16 %v945
    %v1528 = vunpack.c.h.b16 %v945
    %v1529 = vunpack.c.l.b16 %v946
    %v1530 = vunpack.c.h.b16 %v946
    %v1531 = vunpack.c.l.b16 %v947
    %v1532 = vunpack.c.h.b16 %v947
    %v1533 = vunpack.c.l.b16 %v948
    %v1534 = vunpack.c.h.b16 %v948
    %v1535 = vunpack.c.l.b16 %v949
    %v1536 = vunpack.c.h.b16 %v949
    %v1537 = vunpack.c.l.b16 %v950
    %v1538 = vunpack.c.h.b16 %v950
    %v1539 = vunpack.c.l.b16 %v951
    %v1540 = vunpack.c.h.b16 %v951
    %v1541 = vunpack.c.l.b16 %v952
    %v1542 = vunpack.c.h.b16 %v952
    %v1543 = vunpack.c.l.b16 %v953
    %v1544 = vunpack.c.h.b16 %v953
    %v1545 = vunpack.c.l.b16 %v954
    %v1546 = vunpack.c.h.b16 %v954
    %v1547 = vunpack.c.l.b16 %v955
    %v1548 = vunpack.c.h.b16 %v955
    %v1549 = vunpack.c.l.b16 %v956
    %v1550 = vunpack.c.h.b16 %v956
    %v1551 = vunpack.c.l.b16 %v957
    %v1552 = vunpack.c.h.b16 %v957
    %v1553 = vunpack.c.l.b16 %v958
    %v1554 = vunpack.c.h.b16 %v958
    %v1555 = vunpack.c.l.b16 %v959
    %v1556 = vunpack.c.h.b16 %v959
    %v1557 = vunpack.c.l.b16 %v960
    %v1558 = vunpack.c.h.b16 %v960
    %v1559 = vunpack.c.l.b16 %v961
    %v1560 = vunpack.c.h.b16 %v961
    %v1561 = vunpack.c.l.b16 %v962
    %v1562 = vunpack.c.h.b16 %v962
    %v1563 = vunpack.c.l.b16 %v963
    %v1564 = vunpack.c.h.b16 %v963
    %v1565 = vunpack.c.l.b16 %v964
    %v1566 = vunpack.c.h.b16 %v964
    %v1567 = vunpack.c.l.b16 %v965
    %v1568 = vunpack.c.h.b16 %v965
    %v1569 = vunpack.c.l.b16 %v966
    %v1570 = vunpack.c.h.b16 %v966
    %v1571 = vunpack.c.l.b16 %v967
    %v1572 = vunpack.c.h.b16 %v967
    %v1573 = vunpack.c.l.b16 %v968
    %v1574 = vunpack.c.h.b16 %v968
    %v1575 = vunpack.c.l.b16 %v969
    %v1576 = vunpack.c.h.b16 %v969
    %v1577 = vunpack.c.l.b16 %v970
    %v1578 = vunpack.c.h.b16 %v970
    %v1579 = vunpack.c.l.b16 %v971
    %v1580 = vunpack.c.h.b16 %v971
    %v1581 = vunpack.c.l.b16 %v972
    %v1582 = vunpack.c.h.b16 %v972
    %v1583 = vunpack.c.l.b16 %v973
    %v1584 = vunpack.c.h.b16 %v973
    %v1585 = vunpack.c.l.b16 %v974
    %v1586 = vunpack.c.h.b16 %v974
    %v1587 = vunpack.c.l.b16 %v975
    %v1588 = vunpack.c.h.b16 %v975
    %v1589 = vunpack.c.l.b16 %v976
    %v1590 = vunpack.c.h.b16 %v976
    %v1591 = vunpack.c.l.b16 %v977
    %v1592 = vunpack.c.h.b16 %v977
    %v1593 = vunpack.c.l.b16 %v978
    %v1594 = vunpack.c.h.b16 %v978
    %v1595 = vunpack.c.l.b16 %v979
    %v1596 = vunpack.c.h.b16 %v979
    %v1597 = vunpack.c.l.b16 %v980
    %v1598 = vunpack.c.h.b16 %v980
    %v1599 = vunpack.c.l.b16 %v981
    %v1600 = vunpack.c.h.b16 %v981
    %v1601 = vunpack.c.l.b16 %v982
    %v1602 = vunpack.c.h.b16 %v982
    %v1603 = vunpack.c.l.b16 %v983
    %v1604 = vunpack.c.h.b16 %v983
    %v1605 = vunpack.c.l.b16 %v984
    %v1606 = vunpack.c.h.b16 %v984
    %v1607 = vunpack.c.l.b16 %v985
    %v1608 = vunpack.c.h.b16 %v985
    %v1609 = vunpack.c.l.b16 %v986
    %v1610 = vunpack.c.h.b16 %v986
    %v1611 = vunpack.c.l.b16 %v987
    %v1612 = vunpack.c.h.b16 %v987
    %v1613 = vunpack.c.l.b16 %v988
    %v1614 = vunpack.c.h.b16 %v988
    %v1615 = vunpack.c.l.b16 %v989
    %v1616 = vunpack.c.h.b16 %v989
    %v1617 = vunpack.c.l.b16 %v990
    %v1618 = vunpack.c.h.b16 %v990
    %v1619 = vunpack.c.l.b16 %v991
    %v1620 = vunpack.c.h.b16 %v991
    %v1621 = vunpack.c.l.b16 %v992
    %v1622 = vunpack.c.h.b16 %v992
    %v1623 = vunpack.c.l.b16 %v993
    %v1624 = vunpack.c.h.b16 %v993
    %v1625 = vunpack.c.l.b16 %v994
    %v1626 = vunpack.c.h.b16 %v994
    %v1627 = vunpack.c.l.b16 %v995
    %v1628 = vunpack.c.h.b16 %v995
    %v1629 = vunpack.c.l.b16 %v996
    %v1630 = vunpack.c.h.b16 %v996
    %v1631 = vunpack.c.l.b16 %v997
    %v1632 = vunpack.c.h.b16 %v997
    %v1633 = vunpack.c.l.b16 %v998
    %v1634 = vunpack.c.h.b16 %v998
    %v1635 = vunpack.c.l.b16 %v999
    %v1636 = vunpack.c.h.b16 %v999
    %v1637 = vunpack.c.l.b16 %v1000
    %v1638 = vunpack.c.h.b16 %v1000
    %v1639 = vunpack.c.l.b16 %v1001
    %v1640 = vunpack.c.h.b16 %v1001
    %v1641 = vunpack.c.l.b16 %v1002
    %v1642 = vunpack.c.h.b16 %v1002
    %v1643 = vunpack.c.l.b16 %v1003
    %v1644 = vunpack.c.h.b16 %v1003
    %v1645 = vunpack.c.l.b16 %v1004
    %v1646 = vunpack.c.h.b16 %v1004
    %v1647 = vunpack.c.l.b16 %v1005
    %v1648 = vunpack.c.h.b16 %v1005
    %v1649 = vunpack.c.l.b16 %v1006
    %v1650 = vunpack.c.h.b16 %v1006
    %v1651 = vunpack.c.l.b16 %v1007
    %v1652 = vunpack.c.h.b16 %v1007
    %v1653 = vunpack.c.l.b16 %v1008
    %v1654 = vunpack.c.h.b16 %v1008
    %v1655 = vunpack.c.l.b16 %v1009
    %v1656 = vunpack.c.h.b16 %v1009
    %v1657 = vunpack.c.l.b16 %v1010
    %v1658 = vunpack.c.h.b16 %v1010
    %v1659 = vunpack.c.l.b16 %v1011
    %v1660 = vunpack.c.h.b16 %v1011
    %v1661 = vunpack.c.l.b16 %v1012
    %v1662 = vunpack.c.h.b16 %v1012
    %v1663 = vunpack.c.l.b16 %v1013
    %v1664 = vunpack.c.h.b16 %v1013
    %v1665 = vunpack.c.l.b16 %v1014
    %v1666 = vunpack.c.h.b16 %v1014
    %v1667 = vunpack.c.l.b16 %v1015
    %v1668 = vunpack.c.h.b16 %v1015
    %v1669 = vunpack.c.l.b16 %v1016
    %v1670 = vunpack.c.h.b16 %v1016
    %v1671 = vunpack.c.l.b16 %v1017
    %v1672 = vunpack.c.h.b16 %v1017
    %v1673 = vunpack.c.l.b16 %v1018
    %v1674 = vunpack.c.h.b16 %v1018
    %v1675 = vunpack.c.l.b16 %v1019
    %v1676 = vunpack.c.h.b16 %v1019
    %v1677 = vunpack.c.l.b16 %v1020
    %v1678 = vunpack.c.h.b16 %v1020
    %v1679 = vunpack.c.l.b16 %v1021
    %v1680 = vunpack.c.h.b16 %v1021
    %v1681 = vunpack.c.l.b16 %v1022
    %v1682 = vunpack.c.h.b16 %v1022
    %v1683 = vunpack.c.l.b16 %v1023
    %v1684 = vunpack.c.h.b16 %v1023
    %v1685 = vunpack.c.l.b16 %v1024
    %v1686 = vunpack.c.h.b16 %v1024
    %v1687 = vunpack.c.l.b16 %v1025
    %v1688 = vunpack.c.h.b16 %v1025
    %v1689 = vunpack.c.l.b16 %v1026
    %v1690 = vunpack.c.h.b16 %v1026
    %v1691 = vunpack.c.l.b16 %v1027
    %v1692 = vunpack.c.h.b16 %v1027
    %v1693 = vunpack.c.l.b16 %v1028
    %v1694 = vunpack.c.h.b16 %v1028
    %v1695 = vunpack.c.l.b16 %v1029
    %v1696 = vunpack.c.h.b16 %v1029
    %v1697 = vunpack.c.l.b16 %v1030
    %v1698 = vunpack.c.h.b16 %v1030
    %v1699 = vunpack.c.l.b16 %v1031
    %v1700 = vunpack.c.h.b16 %v1031
    %v1701 = vunpack.c.l.b16 %v1032
    %v1702 = vunpack.c.h.b16 %v1032
    %v1703 = vunpack.c.l.b16 %v1033
    %v1704 = vunpack.c.h.b16 %v1033
    %v1705 = vunpack.c.l.b16 %v1034
    %v1706 = vunpack.c.h.b16 %v1034
    %v1707 = vunpack.c.l.b16 %v1035
    %v1708 = vunpack.c.h.b16 %v1035
    %v1709 = vunpack.c.l.b16 %v1036
    %v1710 = vunpack.c.h.b16 %v1036
    %v1711 = vunpack.c.l.b16 %v1037
    %v1712 = vunpack.c.h.b16 %v1037
    %v1713 = vunpack.c.l.b16 %v1038
    %v1714 = vunpack.c.h.b16 %v1038
    %v1715 = vunpack.c.l.b16 %v1039
    %v1716 = vunpack.c.h.b16 %v1039
    %v1717 = vunpack.c.l.b16 %v1040
    %v1718 = vunpack.c.h.b16 %v1040
    %v1719 = vunpack.c.l.b16 %v1041
    %v1720 = vunpack.c.h.b16 %v1041
    %v1721 = vunpack.c.l.b16 %v1042
    %v1722 = vunpack.c.h.b16 %v1042
    %v1723 = vunpack.c.l.b16 %v1043
    %v1724 = vunpack.c.h.b16 %v1043
    %v1725 = vunpack.c.l.b16 %v1044
    %v1726 = vunpack.c.h.b16 %v1044
    %v1727 = vunpack.c.l.b16 %v1045
    %v1728 = vunpack.c.h.b16 %v1045
    %v1729 = vunpack.c.l.b16 %v1046
    %v1730 = vunpack.c.h.b16 %v1046
    %v1731 = vunpack.c.l.b16 %v1047
    %v1732 = vunpack.c.h.b16 %v1047
    %v1733 = vunpack.c.l.b16 %v1048
    %v1734 = vunpack.c.h.b16 %v1048
    %v1735 = vunpack.c.l.b16 %v1049
    %v1736 = vunpack.c.h.b16 %v1049
    %v1737 = vunpack.c.l.b16 %v1050
    %v1738 = vunpack.c.h.b16 %v1050
    %v1739 = vunpack.c.l.b16 %v1051
    %v1740 = vunpack.c.h.b16 %v1051
    %v1741 = vunpack.c.l.b16 %v1052
    %v1742 = vunpack.c.h.b16 %v1052
    %v1743 = vunpack.c.l.b16 %v1053
    %v1744 = vunpack.c.h.b16 %v1053
    %v1745 = vunpack.c.l.b16 %v1054
    %v1746 = vunpack.c.h.b16 %v1054
    %v1747 = vunpack.c.l.b16 %v1055
    %v1748 = vunpack.c.h.b16 %v1055
    %v1749 = vunpack.c.l.b16 %v1056
    %v1750 = vunpack.c.h.b16 %v1056
    %v1751 = vunpack.c.l.b16 %v1057
    %v1752 = vunpack.c.h.b16 %v1057
    %v1753 = vunpack.c.l.b16 %v1058
    %v1754 = vunpack.c.h.b16 %v1058
    %v1755 = vunpack.c.l.b16 %v1059
    %v1756 = vunpack.c.h.b16 %v1059
    %v1757 = vunpack.c.l.b16 %v1060
    %v1758 = vunpack.c.h.b16 %v1060
    %v1759 = vunpack.c.l.b16 %v1061
    %v1760 = vunpack.c.h.b16 %v1061
    %v1761 = vunpack.c.l.b16 %v1062
    %v1762 = vunpack.c.h.b16 %v1062
    %v1763 = vunpack.c.l.b16 %v1063
    %v1764 = vunpack.c.h.b16 %v1063
    %v1765 = vunpack.c.l.b16 %v1064
    %v1766 = vunpack.c.h.b16 %v1064
    %v1767 = vunpack.c.l.b16 %v1065
    %v1768 = vunpack.c.h.b16 %v1065
    %v1769 = vunpack.c.l.b16 %v1066
    %v1770 = vunpack.c.h.b16 %v1066
    %v1771 = vunpack.c.l.b16 %v1067
    %v1772 = vunpack.c.h.b16 %v1067
    %v1773 = vunpack.c.l.b16 %v1068
    %v1774 = vunpack.c.h.b16 %v1068
    %v1775 = vunpack.c.l.b16 %v1069
    %v1776 = vunpack.c.h.b16 %v1069
    %v1777 = vunpack.c.l.b16 %v1070
    %v1778 = vunpack.c.h.b16 %v1070
    %v1779 = vunpack.c.l.b16 %v1071
    %v1780 = vunpack.c.h.b16 %v1071
    %v1781 = vunpack.c.l.b16 %v1072
    %v1782 = vunpack.c.h.b16 %v1072
    %v1783 = vunpack.c.l.b16 %v1073
    %v1784 = vunpack.c.h.b16 %v1073
    %v1785 = vunpack.c.l.b16 %v1074
    %v1786 = vunpack.c.h.b16 %v1074
    %v1787 = vunpack.c.l.b16 %v1075
    %v1788 = vunpack.c.h.b16 %v1075
    %v1789 = vunpack.c.l.b16 %v1076
    %v1790 = vunpack.c.h.b16 %v1076
    %v1791 = vunpack.c.l.b16 %v1077
    %v1792 = vunpack.c.h.b16 %v1077
    %v1793 = vunpack.c.l.b16 %v1078
    %v1794 = vunpack.c.h.b16 %v1078
    %v1795 = vunpack.c.l.b16 %v1079
    %v1796 = vunpack.c.h.b16 %v1079
    %v1797 = vunpack.c.l.b16 %v1080
    %v1798 = vunpack.c.h.b16 %v1080
    %v1799 = vunpack.c.l.b16 %v1081
    %v1800 = vunpack.c.h.b16 %v1081
    %v1801 = vunpack.c.l.b16 %v1082
    %v1802 = vunpack.c.h.b16 %v1082
    %v1803 = vunpack.c.l.b16 %v1083
    %v1804 = vunpack.c.h.b16 %v1083
    %v1805 = vunpack.c.l.b16 %v1084
    %v1806 = vunpack.c.h.b16 %v1084
    %v1807 = vunpack.c.l.b16 %v1085
    %v1808 = vunpack.c.h.b16 %v1085
    %v1809 = vunpack.c.l.b16 %v1086
    %v1810 = vunpack.c.h.b16 %v1086
    %v1811 = vunpack.c.l.b16 %v1087
    %v1812 = vunpack.c.h.b16 %v1087
    %v1813 = vunpack.c.l.b16 %v1088
    %v1814 = vunpack.c.h.b16 %v1088
    %v1815 = vunpack.c.l.b16 %v1089
    %v1816 = vunpack.c.h.b16 %v1089
    %v1817 = vunpack.c.l.b16 %v1090
    %v1818 = vunpack.c.h.b16 %v1090
    %v1819 = vunpack.c.l.b16 %v1091
    %v1820 = vunpack.c.h.b16 %v1091
    %v1821 = vunpack.c.l.b16 %v1092
    %v1822 = vunpack.c.h.b16 %v1092
    %v1823 = vunpack.c.l.b16 %v1093
    %v1824 = vunpack.c.h.b16 %v1093
    %v1825 = vunpack.c.l.b16 %v1094
    %v1826 = vunpack.c.h.b16 %v1094
    %v1827 = vunpack.c.l.b16 %v1095
    %v1828 = vunpack.c.h.b16 %v1095
    %v1829 = vunpack.c.l.b16 %v1096
    %v1830 = vunpack.c.h.b16 %v1096
    %v1831 = vunpack.c.l.b16 %v1097
    %v1832 = vunpack.c.h.b16 %v1097
    %v1833 = vunpack.c.l.b16 %v1098
    %v1834 = vunpack.c.h.b16 %v1098
    %v1835 = vunpack.c.l.b16 %v1099
    %v1836 = vunpack.c.h.b16 %v1099
    %v1837 = vunpack.c.l.b16 %v1100
    %v1838 = vunpack.c.h.b16 %v1100
    %v1839 = vunpack.c.l.b16 %v1101
    %v1840 = vunpack.c.h.b16 %v1101
    %v1841 = vunpack.c.l.b16 %v1102
    %v1842 = vunpack.c.h.b16 %v1102
    %v1843 = vunpack.c.l.b16 %v1103
    %v1844 = vunpack.c.h.b16 %v1103
    %v1845 = vunpack.c.l.b16 %v1104
    %v1846 = vunpack.c.h.b16 %v1104
    %v1847 = vunpack.c.l.b16 %v1105
    %v1848 = vunpack.c.h.b16 %v1105
    %v1849 = vunpack.c.l.b16 %v1106
    %v1850 = vunpack.c.h.b16 %v1106
    %v1851 = vunpack.c.l.b16 %v1107
    %v1852 = vunpack.c.h.b16 %v1107
    %v1853 = vunpack.c.l.b16 %v1108
    %v1854 = vunpack.c.h.b16 %v1108
    %v1855 = vunpack.c.l.b16 %v1109
    %v1856 = vunpack.c.h.b16 %v1109
    %v1857 = vunpack.c.l.b16 %v1110
    %v1858 = vunpack.c.h.b16 %v1110
    %v1859 = vunpack.c.l.b16 %v1111
    %v1860 = vunpack.c.h.b16 %v1111
    %v1861 = vunpack.c.l.b16 %v1112
    %v1862 = vunpack.c.h.b16 %v1112
    %v1863 = vunpack.c.l.b16 %v1113
    %v1864 = vunpack.c.h.b16 %v1113
    %v1865 = vunpack.c.l.b16 %v1114
    %v1866 = vunpack.c.h.b16 %v1114
    %v1867 = vunpack.c.l.b16 %v1115
    %v1868 = vunpack.c.h.b16 %v1115
    %v1869 = vunpack.c.l.b16 %v1116
    %v1870 = vunpack.c.h.b16 %v1116
    %v1871 = vunpack.c.l.b16 %v1117
    %v1872 = vunpack.c.h.b16 %v1117
    %v1873 = vunpack.c.l.b16 %v1118
    %v1874 = vunpack.c.h.b16 %v1118
    %v1875 = vunpack.c.l.b16 %v1119
    %v1876 = vunpack.c.h.b16 %v1119
    %v1877 = vunpack.c.l.b16 %v1120
    %v1878 = vunpack.c.h.b16 %v1120
    %v1879 = vunpack.c.l.b16 %v1121
    %v1880 = vunpack.c.h.b16 %v1121
    %v1881 = vunpack.c.l.b16 %v1122
    %v1882 = vunpack.c.h.b16 %v1122
    %v1883 = vunpack.c.l.b16 %v1123
    %v1884 = vunpack.c.h.b16 %v1123
    %v1885 = vunpack.c.l.b16 %v1124
    %v1886 = vunpack.c.h.b16 %v1124
    %v1887 = vunpack.c.l.b16 %v1125
    %v1888 = vunpack.c.h.b16 %v1125
    %v1889 = vunpack.c.l.b16 %v1126
    %v1890 = vunpack.c.h.b16 %v1126
    %v1891 = vunpack.c.l.b16 %v1127
    %v1892 = vunpack.c.h.b16 %v1127
    %v1893 = vunpack.c.l.b16 %v1128
    %v1894 = vunpack.c.h.b16 %v1128
    %v1895 = vunpack.c.l.b16 %v1129
    %v1896 = vunpack.c.h.b16 %v1129
    %v1897 = vunpack.c.l.b16 %v1130
    %v1898 = vunpack.c.h.b16 %v1130
    %v1899 = vunpack.c.l.b16 %v1131
    %v1900 = vunpack.c.h.b16 %v1131
    %v1901 = vunpack.c.l.b16 %v1132
    %v1902 = vunpack.c.h.b16 %v1132
    %v1903 = vunpack.c.l.b16 %v1133
    %v1904 = vunpack.c.h.b16 %v1133
    %v1905 = vunpack.c.l.b16 %v1134
    %v1906 = vunpack.c.h.b16 %v1134
    %v1907 = vunpack.c.l.b16 %v1135
    %v1908 = vunpack.c.h.b16 %v1135
    %v1909 = vunpack.c.l.b16 %v1136
    %v1910 = vunpack.c.h.b16 %v1136
    %v1911 = vunpack.c.l.b16 %v1137
    %v1912 = vunpack.c.h.b16 %v1137
    %v1913 = vunpack.c.l.b16 %v1138
    %v1914 = vunpack.c.h.b16 %v1138
    %v1915 = vunpack.c.l.b16 %v1139
    %v1916 = vunpack.c.h.b16 %v1139
    %v1917 = vunpack.c.l.b16 %v1140
    %v1918 = vunpack.c.h.b16 %v1140
    %v1919 = vunpack.c.l.b16 %v1141
    %v1920 = vunpack.c.h.b16 %v1141
    %v1921 = vunpack.c.l.b16 %v1142
    %v1922 = vunpack.c.h.b16 %v1142
    %v1923 = vunpack.c.l.b16 %v1143
    %v1924 = vunpack.c.h.b16 %v1143
    %v1925 = vunpack.c.l.b16 %v1144
    %v1926 = vunpack.c.h.b16 %v1144
    %v1927 = vunpack.c.l.b16 %v1145
    %v1928 = vunpack.c.h.b16 %v1145
    %v1929 = vunpack.c.l.b16 %v1146
    %v1930 = vunpack.c.h.b16 %v1146
    %v1931 = vunpack.c.l.b16 %v1147
    %v1932 = vunpack.c.h.b16 %v1147
    %v1933 = vunpack.c.l.b16 %v1148
    %v1934 = vunpack.c.h.b16 %v1148
    %v1935 = vunpack.c.l.b16 %v1149
    %v1936 = vunpack.c.h.b16 %v1149
    %v1937 = vunpack.c.l.b16 %v1150
    %v1938 = vunpack.c.h.b16 %v1150
    %v1939 = vunpack.c.l.b16 %v1151
    %v1940 = vunpack.c.h.b16 %v1151
    %v1941 = vunpack.c.l.b16 %v1152
    %v1942 = vunpack.c.h.b16 %v1152
    %v1943 = vunpack.c.l.b16 %v1153
    %v1944 = vunpack.c.h.b16 %v1153
    %v1945 = vunpack.c.l.b16 %v1154
    %v1946 = vunpack.c.h.b16 %v1154
    %v1947 = vunpack.c.l.b16 %v1155
    %v1948 = vunpack.c.h.b16 %v1155
    %v1949 = vunpack.c.l.b16 %v1156
    %v1950 = vunpack.c.h.b16 %v1156
    %v1951 = vunpack.c.l.b16 %v1157
    %v1952 = vunpack.c.h.b16 %v1157
    %v1953 = vunpack.c.l.b16 %v1158
    %v1954 = vunpack.c.h.b16 %v1158
    %v1955 = vunpack.c.l.b16 %v1159
    %v1956 = vunpack.c.h.b16 %v1159
    %v1957 = vunpack.c.l.b16 %v1160
    %v1958 = vunpack.c.h.b16 %v1160
    %v1959 = vunpack.c.l.b16 %v1161
    %v1960 = vunpack.c.h.b16 %v1161
    %v1961 = vunpack.c.l.b16 %v1162
    %v1962 = vunpack.c.h.b16 %v1162
    %v1963 = vunpack.c.l.b16 %v1163
    %v1964 = vunpack.c.h.b16 %v1163
    %v1965 = vunpack.c.l.b16 %v1164
    %v1966 = vunpack.c.h.b16 %v1164
    %v1967 = vunpack.c.l.b16 %v1165
    %v1968 = vunpack.c.h.b16 %v1165
    %v1969 = vunpack.c.l.b16 %v1166
    %v1970 = vunpack.c.h.b16 %v1166
    %v1971 = vunpack.c.l.b16 %v1167
    %v1972 = vunpack.c.h.b16 %v1167
    %v1973 = vunpack.c.l.b16 %v1168
    %v1974 = vunpack.c.h.b16 %v1168
    %v1975 = vunpack.c.l.b16 %v1169
    %v1976 = vunpack.c.h.b16 %v1169
    %v1977 = vunpack.c.l.b16 %v1170
    %v1978 = vunpack.c.h.b16 %v1170
    %v1979 = vunpack.c.l.b16 %v1171
    %v1980 = vunpack.c.h.b16 %v1171
    %v1981 = vunpack.c.l.b16 %v1172
    %v1982 = vunpack.c.h.b16 %v1172
    %v1983 = vpack.c.b16 %v1479, %v1471
    %v1984 = vpack.c.b16 %v1480, %v1472
    %v1985 = vpack.c.b16 %v1481, %v1473
    %v1986 = vpack.c.b16 %v1482, %v1474
    %v1987 = vpack.c.b16 %v1483, %v1475
    %v1988 = vpack.c.b16 %v1484, %v1476
    %v1989 = vpack.c.b16 %v1485, %v1477
    %v1990 = vpack.c.b16 %v1486, %v1478
    %v1991 = vpack.c.b16 %v1495, %v1487
    %v1992 = vpack.c.b16 %v1496, %v1488
    %v1993 = vpack.c.b16 %v1497, %v1489
    %v1994 = vpack.c.b16 %v1498, %v1490
    %v1995 = vpack.c.b16 %v1499, %v1491
    %v1996 = vpack.c.b16 %v1500, %v1492
    %v1997 = vpack.c.b16 %v1501, %v1493
    %v1998 = vpack.c.b16 %v1502, %v1494
    %v1999 = vpack.c.b16 %v1511, %v1503
    %v2000 = vpack.c.b16 %v1512, %v1504
    %v2001 = vpack.c.b16 %v1513, %v1505
    %v2002 = vpack.c.b16 %v1514, %v1506
    %v2003 = vpack.c.b16 %v1515, %v1507
    %v2004 = vpack.c.b16 %v1516, %v1508
    %v2005 = vpack.c.b16 %v1517, %v1509
    %v2006 = vpack.c.b16 %v1518, %v1510
    %v2007 = vpack.c.b16 %v1527, %v1519
    %v2008 = vpack.c.b16 %v1528, %v1520
    %v2009 = vpack.c.b16 %v1529, %v1521
    %v2010 = vpack.c.b16 %v1530, %v1522
    %v2011 = vpack.c.b16 %v1531, %v1523
    %v2012 = vpack.c.b16 %v1532, %v1524
    %v2013 = vpack.c.b16 %v1533, %v1525
    %v2014 = vpack.c.b16 %v1534, %v1526
    %v2015 = vpack.c.b16 %v1543, %v1535
    %v2016 = vpack.c.b16 %v1544, %v1536
    %v2017 = vpack.c.b16 %v1545, %v1537
    %v2018 = vpack.c.b16 %v1546, %v1538
    %v2019 = vpack.c.b16 %v1547, %v1539
    %v2020 = vpack.c.b16 %v1548, %v1540
    %v2021 = vpack.c.b16 %v1549, %v1541
    %v2022 = vpack.c.b16 %v1550, %v1542
    %v2023 = vpack.c.b16 %v1559, %v1551
    %v2024 = vpack.c.b16 %v1560, %v1552
    %v2025 = vpack.c.b16 %v1561, %v1553
    %v2026 = vpack.c.b16 %v1562, %v1554
    %v2027 = vpack.c.b16 %v1563, %v1555
    %v2028 = vpack.c.b16 %v1564, %v1556
    %v2029 = vpack.c.b16 %v1565, %v1557
    %v2030 = vpack.c.b16 %v1566, %v1558
    %v2031 = vpack.c.b16 %v1575, %v1567
    %v2032 = vpack.c.b16 %v1576, %v1568
    %v2033 = vpack.c.b16 %v1577, %v1569
    %v2034 = vpack.c.b16 %v1578, %v1570
    %v2035 = vpack.c.b16 %v1579, %v1571
    %v2036 = vpack.c.b16 %v1580, %v1572
    %v2037 = vpack.c.b16 %v1581, %v1573
    %v2038 = vpack.c.b16 %v1582, %v1574
    %v2039 = vpack.c.b16 %v1591, %v1583
    %v2040 = vpack.c.b16 %v1592, %v1584
    %v2041 = vpack.c.b16 %v1593, %v1585
    %v2042 = vpack.c.b16 %v1594, %v1586
    %v2043 = vpack.c.b16 %v1595, %v1587
    %v2044 = vpack.c.b16 %v1596, %v1588
    %v2045 = vpack.c.b16 %v1597, %v1589
    %v2046 = vpack.c.b16 %v1598, %v1590
    %v2047 = vpack.c.b16 %v1607, %v1599
    %v2048 = vpack.c.b16 %v1608, %v1600
    %v2049 = vpack.c.b16 %v1609, %v1601
    %v2050 = vpack.c.b16 %v1610, %v1602
    %v2051 = vpack.c.b16 %v1611, %v1603
    %v2052 = vpack.c.b16 %v1612, %v1604
    %v2053 = vpack.c.b16 %v1613, %v1605
    %v2054 = vpack.c.b16 %v1614, %v1606
    %v2055 = vpack.c.b16 %v1623, %v1615
    %v2056 = vpack.c.b16 %v1624, %v1616
    %v2057 = vpack.c.b16 %v1625, %v1617
    %v2058 = vpack.c.b16 %v1626, %v1618
    %v2059 = vpack.c.b16 %v1627, %v1619
    %v2060 = vpack.c.b16 %v1628, %v1620
    %v2061 = vpack.c.b16 %v1629, %v1621
    %v2062 = vpack.c.b16 %v1630, %v1622
    %v2063 = vpack.c.b16 %v1639, %v1631
    %v2064 = vpack.c.b16 %v1640, %v1632
    %v2065 = vpack.c.b16 %v1641, %v1633
    %v2066 = vpack.c.b16 %v1642, %v1634
    %v2067 = vpack.c.b16 %v1643, %v1635
    %v2068 = vpack.c.b16 %v1644, %v1636
    %v2069 = vpack.c.b16 %v1645, %v1637
    %v2070 = vpack.c.b16 %v1646, %v1638
    %v2071 = vpack.c.b16 %v1655, %v1647
    %v2072 = vpack.c.b16 %v1656, %v1648
    %v2073 = vpack.c.b16 %v1657, %v1649
    %v2074 = vpack.c.b16 %v1658, %v1650
    %v2075 = vpack.c.b16 %v1659, %v1651
    %v2076 = vpack.c.b16 %v1660, %v1652
    %v2077 = vpack.c.b16 %v1661, %v1653
    %v2078 = vpack.c.b16 %v1662, %v1654
    %v2079 = vpack.c.b16 %v1671, %v1663
    %v2080 = vpack.c.b16 %v1672, %v1664
    %v2081 = vpack.c.b16 %v1673, %v1665
    %v2082 = vpack.c.b16 %v1674, %v1666
    %v2083 = vpack.c.b16 %v1675, %v1667
    %v2084 = vpack.c.b16 %v1676, %v1668
    %v2085 = vpack.c.b16 %v1677, %v1669
    %v2086 = vpack.c.b16 %v1678, %v1670
    %v2087 = vpack.c.b16 %v1687, %v1679
    %v2088 = vpack.c.b16 %v1688, %v1680
    %v2089 = vpack.c.b16 %v1689, %v1681
    %v2090 = vpack.c.b16 %v1690, %v1682
    %v2091 = vpack.c.b16 %v1691, %v1683
    %v2092 = vpack.c.b16 %v1692, %v1684
    %v2093 = vpack.c.b16 %v1693, %v1685
    %v2094 = vpack.c.b16 %v1694, %v1686
    %v2095 = vpack.c.b16 %v1703, %v1695
    %v2096 = vpack.c.b16 %v1704, %v1696
    %v2097 = vpack.c.b16 %v1705, %v1697
    %v2098 = vpack.c.b16 %v1706, %v1698
    %v2099 = vpack.c.b16 %v1707, %v1699
    %v2100 = vpack.c.b16 %v1708, %v1700
    %v2101 = vpack.c.b16 %v1709, %v1701
    %v2102 = vpack.c.b16 %v1710, %v1702
    %v2103 = vpack.c.b16 %v1719, %v1711
    %v2104 = vpack.c.b16 %v1720, %v1712
    %v2105 = vpack.c.b16 %v1721, %v1713
    %v2106 = vpack.c.b16 %v1722, %v1714
    %v2107 = vpack.c.b16 %v1723, %v1715
    %v2108 = vpack.c.b16 %v1724, %v1716
    %v2109 = vpack.c.b16 %v1725, %v1717
    %v2110 = vpack.c.b16 %v1726, %v1718
    %v2111 = vpack.c.b16 %v1735, %v1727
    %v2112 = vpack.c.b16 %v1736, %v1728
    %v2113 = vpack.c.b16 %v1737, %v1729
    %v2114 = vpack.c.b16 %v1738, %v1730
    %v2115 = vpack.c.b16 %v1739, %v1731
    %v2116 = vpack.c.b16 %v1740, %v1732
    %v2117 = vpack.c.b16 %v1741, %v1733
    %v2118 = vpack.c.b16 %v1742, %v1734
    %v2119 = vpack.c.b16 %v1751, %v1743
    %v2120 = vpack.c.b16 %v1752, %v1744
    %v2121 = vpack.c.b16 %v1753, %v1745
    %v2122 = vpack.c.b16 %v1754, %v1746
    %v2123 = vpack.c.b16 %v1755, %v1747
    %v2124 = vpack.c.b16 %v1756, %v1748
    %v2125 = vpack.c.b16 %v1757, %v1749
    %v2126 = vpack.c.b16 %v1758, %v1750
    %v2127 = vpack.c.b16 %v1767, %v1759
    %v2128 = vpack.c.b16 %v1768, %v1760
    %v2129 = vpack.c.b16 %v1769, %v1761
    %v2130 = vpack.c.b16 %v1770, %v1762
    %v2131 = vpack.c.b16 %v1771, %v1763
    %v2132 = vpack.c.b16 %v1772, %v1764
    %v2133 = vpack.c.b16 %v1773, %v1765
    %v2134 = vpack.c.b16 %v1774, %v1766
    %v2135 = vpack.c.b16 %v1783, %v1775
    %v2136 = vpack.c.b16 %v1784, %v1776
    %v2137 = vpack.c.b16 %v1785, %v1777
    %v2138 = vpack.c.b16 %v1786, %v1778
    %v2139 = vpack.c.b16 %v1787, %v1779
    %v2140 = vpack.c.b16 %v1788, %v1780
    %v2141 = vpack.c.b16 %v1789, %v1781
    %v2142 = vpack.c.b16 %v1790, %v1782
    %v2143 = vpack.c.b16 %v1799, %v1791
    %v2144 = vpack.c.b16 %v1800, %v1792
    %v2145 = vpack.c.b16 %v1801, %v1793
    %v2146 = vpack.c.b16 %v1802, %v1794
    %v2147 = vpack.c.b16 %v1803, %v1795
    %v2148 = vpack.c.b16 %v1804, %v1796
    %v2149 = vpack.c.b16 %v1805, %v1797
    %v2150 = vpack.c.b16 %v1806, %v1798
    %v2151 = vpack.c.b16 %v1815, %v1807
    %v2152 = vpack.c.b16 %v1816, %v1808
    %v2153 = vpack.c.b16 %v1817, %v1809
    %v2154 = vpack.c.b16 %v1818, %v1810
    %v2155 = vpack.c.b16 %v1819, %v1811
    %v2156 = vpack.c.b16 %v1820, %v1812
    %v2157 = vpack.c.b16 %v1821, %v1813
    %v2158 = vpack.c.b16 %v1822, %v1814
    %v2159 = vpack.c.b16 %v1831, %v1823
    %v2160 = vpack.c.b16 %v1832, %v1824
    %v2161 = vpack.c.b16 %v1833, %v1825
    %v2162 = vpack.c.b16 %v1834, %v1826
    %v2163 = vpack.c.b16 %v1835, %v1827
    %v2164 = vpack.c.b16 %v1836, %v1828
    %v2165 = vpack.c.b16 %v1837, %v1829
    %v2166 = vpack.c.b16 %v1838, %v1830
    %v2167 = vpack.c.b16 %v1847, %v1839
    %v2168 = vpack.c.b16 %v1848, %v1840
    %v2169 = vpack.c.b16 %v1849, %v1841
    %v2170 = vpack.c.b16 %v1850, %v1842
    %v2171 = vpack.c.b16 %v1851, %v1843
    %v2172 = vpack.c.b16 %v1852, %v1844
    %v2173 = vpack.c.b16 %v1853, %v1845
    %v2174 = vpack.c.b16 %v1854, %v1846
    %v2175 = vpack.c.b16 %v1863, %v1855
    %v2176 = vpack.c.b16 %v1864, %v1856
    %v2177 = vpack.c.b16 %v1865, %v1857
    %v2178 = vpack.c.b16 %v1866, %v1858
    %v2179 = vpack.c.b16 %v1867, %v1859
    %v2180 = vpack.c.b16 %v1868, %v1860
    %v2181 = vpack.c.b16 %v1869, %v1861
    %v2182 = vpack.c.b16 %v1870, %v1862
    %v2183 = vpack.c.b16 %v1879, %v1871
    %v2184 = vpack.c.b16 %v1880, %v1872
    %v2185 = vpack.c.b16 %v1881, %v1873
    %v2186 = vpack.c.b16 %v1882, %v1874
    %v2187 = vpack.c.b16 %v1883, %v1875
    %v2188 = vpack.c.b16 %v1884, %v1876
    %v2189 = vpack.c.b16 %v1885, %v1877
    %v2190 = vpack.c.b16 %v1886, %v1878
    %v2191 = vpack.c.b16 %v1895, %v1887
    %v2192 = vpack.c.b16 %v1896, %v1888
    %v2193 = vpack.c.b16 %v1897, %v1889
    %v2194 = vpack.c.b16 %v1898, %v1890
    %v2195 = vpack.c.b16 %v1899, %v1891
    %v2196 = vpack.c.b16 %v1900, %v1892
    %v2197 = vpack.c.b16 %v1901, %v1893
    %v2198 = vpack.c.b16 %v1902, %v1894
    %v2199 = vpack.c.b16 %v1911, %v1903
    %v2200 = vpack.c.b16 %v1912, %v1904
    %v2201 = vpack.c.b16 %v1913, %v1905
    %v2202 = vpack.c.b16 %v1914, %v1906
    %v2203 = vpack.c.b16 %v1915, %v1907
    %v2204 = vpack.c.b16 %v1916, %v1908
    %v2205 = vpack.c.b16 %v1917, %v1909
    %v2206 = vpack.c.b16 %v1918, %v1910
    %v2207 = vpack.c.b16 %v1927, %v1919
    %v2208 = vpack.c.b16 %v1928, %v1920
    %v2209 = vpack.c.b16 %v1929, %v1921
    %v2210 = vpack.c.b16 %v1930, %v1922
    %v2211 = vpack.c.b16 %v1931, %v1923
    %v2212 = vpack.c.b16 %v1932, %v1924
    %v2213 = vpack.c.b16 %v1933, %v1925
    %v2214 = vpack.c.b16 %v1934, %v1926
    %v2215 = vpack.c.b16 %v1943, %v1935
    %v2216 = vpack.c.b16 %v1944, %v1936
    %v2217 = vpack.c.b16 %v1945, %v1937
    %v2218 = vpack.c.b16 %v1946, %v1938
    %v2219 = vpack.c.b16 %v1947, %v1939
    %v2220 = vpack.c.b16 %v1948, %v1940
    %v2221 = vpack.c.b16 %v1949, %v1941
    %v2222 = vpack.c.b16 %v1950, %v1942
    %v2223 = vpack.c.b16 %v1959, %v1951
    %v2224 = vpack.c.b16 %v1960, %v1952
    %v2225 = vpack.c.b16 %v1961, %v1953
    %v2226 = vpack.c.b16 %v1962, %v1954
    %v2227 = vpack.c.b16 %v1963, %v1955
    %v2228 = vpack.c.b16 %v1964, %v1956
    %v2229 = vpack.c.b16 %v1965, %v1957
    %v2230 = vpack.c.b16 %v1966, %v1958
    %v2231 = vpack.c.b16 %v1975, %v1967
    %v2232 = vpack.c.b16 %v1976, %v1968
    %v2233 = vpack.c.b16 %v1977, %v1969
    %v2234 = vpack.c.b16 %v1978, %v1970
    %v2235 = vpack.c.b16 %v1979, %v1971
    %v2236 = vpack.c.b16 %v1980, %v1972
    %v2237 = vpack.c.b16 %v1981, %v1973
    %v2238 = vpack.c.b16 %v1982, %v1974
    %2495 = vmatprep.subr.bf16.mxu0 %v2040
    %2496 = vmatpush1.bf16.msra.mxu0 %v2039
    %2497 = vmatprep.subr.bf16.mxu0 %v2032
    %2498 = vmatpush1.bf16.msra.mxu0 %v2031
    %2499 = vmatprep.subr.bf16.mxu0 %v2024
    %2500 = vmatpush1.bf16.msra.mxu0 %v2023
    %2501 = vmatprep.subr.bf16.mxu0 %v2016
    %2502 = vmatpush1.bf16.msra.mxu0 %v2015
    %2503 = vmatprep.subr.bf16.mxu0 %v2008
    %2504 = vmatpush1.bf16.msra.mxu0 %v2007
    %2505 = vmatprep.subr.bf16.mxu0 %v2000
    %2506 = vmatpush1.bf16.msra.mxu0 %v1999
    %2507 = vmatprep.subr.bf16.mxu0 %v1992
    %2508 = vmatpush1.bf16.msra.mxu0 %v1991
    %2509 = vmatprep.subr.bf16.mxu0 %v1984
    %2510 = vmatpush1.bf16.msra.mxu0 %v1983
    %2511 = vmatprep.subr.bf16.mxu0 %v2104
    %2512 = vmatpush2.bf16.msra.mxu0 %v2103
    %2513 = vmatprep.subr.bf16.mxu0 %v2096
    %2514 = vmatpush2.bf16.msra.mxu0 %v2095
    %2515 = vmatprep.subr.bf16.mxu0 %v2088
    %2516 = vmatpush2.bf16.msra.mxu0 %v2087
    %2517 = vmatprep.subr.bf16.mxu0 %v2080
    %2518 = vmatpush2.bf16.msra.mxu0 %v2079
    %2519 = vmatprep.subr.bf16.mxu0 %v2072
    %2520 = vmatpush2.bf16.msra.mxu0 %v2071
    %2521 = vmatprep.subr.bf16.mxu0 %v2064
    %2522 = vmatpush2.bf16.msra.mxu0 %v2063
    %2523 = vmatprep.subr.bf16.mxu0 %v2056
    %2524 = vmatpush2.bf16.msra.mxu0 %v2055
    %2525 = vmatprep.subr.bf16.mxu0 %v2048
    %2526 = vmatpush2.bf16.msra.mxu0 %v2047
    %2527 = vmatprep.mubr.bf16.mxu0 %v914
    %2528 = vmatmul.mubr.bf16.gmra.mxu0 %v913
    %v2529 = vpop.f32.mrf.mxu0
    %v2530 = vadd.f32 %v1178, %v2529
    %v2531 = vpop.f32.mrf.mxu0
    %v2532 = vadd.f32 %v1182, %v2531
    %v2533 = vpop.f32.mrf.mxu0
    %v2534 = vadd.f32 %v1178, %v2533
    %v2535 = vpop.f32.mrf.mxu0
    %v2536 = vadd.f32 %v1182, %v2535
    %2537 = vdwg.mxu0
    %2538 = vmatprep.subr.bf16.mxu0 %v2168
    %2539 = vmatpush1.bf16.msra.mxu0 %v2167
    %2540 = vmatprep.subr.bf16.mxu0 %v2160
    %2541 = vmatpush1.bf16.msra.mxu0 %v2159
    %2542 = vmatprep.subr.bf16.mxu0 %v2152
    %2543 = vmatpush1.bf16.msra.mxu0 %v2151
    %2544 = vmatprep.subr.bf16.mxu0 %v2144
    %2545 = vmatpush1.bf16.msra.mxu0 %v2143
    %2546 = vmatprep.subr.bf16.mxu0 %v2136
    %2547 = vmatpush1.bf16.msra.mxu0 %v2135
    %2548 = vmatprep.subr.bf16.mxu0 %v2128
    %2549 = vmatpush1.bf16.msra.mxu0 %v2127
    %2550 = vmatprep.subr.bf16.mxu0 %v2120
    %2551 = vmatpush1.bf16.msra.mxu0 %v2119
    %2552 = vmatprep.subr.bf16.mxu0 %v2112
    %2553 = vmatpush1.bf16.msra.mxu0 %v2111
    %2554 = vmatprep.subr.bf16.mxu0 %v2232
    %2555 = vmatpush2.bf16.msra.mxu0 %v2231
    %2556 = vmatprep.subr.bf16.mxu0 %v2224
    %2557 = vmatpush2.bf16.msra.mxu0 %v2223
    %2558 = vmatprep.subr.bf16.mxu0 %v2216
    %2559 = vmatpush2.bf16.msra.mxu0 %v2215
    %2560 = vmatprep.subr.bf16.mxu0 %v2208
    %2561 = vmatpush2.bf16.msra.mxu0 %v2207
    %2562 = vmatprep.subr.bf16.mxu0 %v2200
    %2563 = vmatpush2.bf16.msra.mxu0 %v2199
    %2564 = vmatprep.subr.bf16.mxu0 %v2192
    %2565 = vmatpush2.bf16.msra.mxu0 %v2191
    %2566 = vmatprep.subr.bf16.mxu0 %v2184
    %2567 = vmatpush2.bf16.msra.mxu0 %v2183
    %2568 = vmatprep.subr.bf16.mxu0 %v2176
    %2569 = vmatpush2.bf16.msra.mxu0 %v2175
    %2570 = vmatprep.mubr.bf16.mxu0 %v916
    %2571 = vmatmul.mubr.bf16.gmra.mxu0 %v915
    %v2572 = vpop.f32.mrf.mxu0
    %v2573 = vadd.f32 %v2530, %v2572
    %v2574 = vpop.f32.mrf.mxu0
    %v2575 = vadd.f32 %v2532, %v2574
    %v2576 = vpop.f32.mrf.mxu0
    %v2577 = vadd.f32 %v2534, %v2576
    %v2578 = vpop.f32.mrf.mxu0
    %v2579 = vadd.f32 %v2536, %v2578
    %2580 = vdwg.mxu0
    %2581 = vmatprep.subr.bf16.mxu0 %v2042
    %2582 = vmatpush1.bf16.msra.mxu0 %v2041
    %2583 = vmatprep.subr.bf16.mxu0 %v2034
    %2584 = vmatpush1.bf16.msra.mxu0 %v2033
    %2585 = vmatprep.subr.bf16.mxu0 %v2026
    %2586 = vmatpush1.bf16.msra.mxu0 %v2025
    %2587 = vmatprep.subr.bf16.mxu0 %v2018
    %2588 = vmatpush1.bf16.msra.mxu0 %v2017
    %2589 = vmatprep.subr.bf16.mxu0 %v2010
    %2590 = vmatpush1.bf16.msra.mxu0 %v2009
    %2591 = vmatprep.subr.bf16.mxu0 %v2002
    %2592 = vmatpush1.bf16.msra.mxu0 %v2001
    %2593 = vmatprep.subr.bf16.mxu0 %v1994
    %2594 = vmatpush1.bf16.msra.mxu0 %v1993
    %2595 = vmatprep.subr.bf16.mxu0 %v1986
    %2596 = vmatpush1.bf16.msra.mxu0 %v1985
    %2597 = vmatprep.subr.bf16.mxu0 %v2106
    %2598 = vmatpush2.bf16.msra.mxu0 %v2105
    %2599 = vmatprep.subr.bf16.mxu0 %v2098
    %2600 = vmatpush2.bf16.msra.mxu0 %v2097
    %2601 = vmatprep.subr.bf16.mxu0 %v2090
    %2602 = vmatpush2.bf16.msra.mxu0 %v2089
    %2603 = vmatprep.subr.bf16.mxu0 %v2082
    %2604 = vmatpush2.bf16.msra.mxu0 %v2081
    %2605 = vmatprep.subr.bf16.mxu0 %v2074
    %2606 = vmatpush2.bf16.msra.mxu0 %v2073
    %2607 = vmatprep.subr.bf16.mxu0 %v2066
    %2608 = vmatpush2.bf16.msra.mxu0 %v2065
    %2609 = vmatprep.subr.bf16.mxu0 %v2058
    %2610 = vmatpush2.bf16.msra.mxu0 %v2057
    %2611 = vmatprep.subr.bf16.mxu0 %v2050
    %2612 = vmatpush2.bf16.msra.mxu0 %v2049
    %2613 = vmatprep.mubr.bf16.mxu0 %v914
    %2614 = vmatmul.mubr.bf16.gmra.mxu0 %v913
    %v2615 = vpop.f32.mrf.mxu0
    %v2616 = vadd.f32 %v1186, %v2615
    %v2617 = vpop.f32.mrf.mxu0
    %v2618 = vadd.f32 %v1190, %v2617
    %v2619 = vpop.f32.mrf.mxu0
    %v2620 = vadd.f32 %v1186, %v2619
    %v2621 = vpop.f32.mrf.mxu0
    %v2622 = vadd.f32 %v1190, %v2621
    %2623 = vdwg.mxu0
    %2624 = vmatprep.subr.bf16.mxu0 %v2170
    %2625 = vmatpush1.bf16.msra.mxu0 %v2169
    %2626 = vmatprep.subr.bf16.mxu0 %v2162
    %2627 = vmatpush1.bf16.msra.mxu0 %v2161
    %2628 = vmatprep.subr.bf16.mxu0 %v2154
    %2629 = vmatpush1.bf16.msra.mxu0 %v2153
    %2630 = vmatprep.subr.bf16.mxu0 %v2146
    %2631 = vmatpush1.bf16.msra.mxu0 %v2145
    %2632 = vmatprep.subr.bf16.mxu0 %v2138
    %2633 = vmatpush1.bf16.msra.mxu0 %v2137
    %2634 = vmatprep.subr.bf16.mxu0 %v2130
    %2635 = vmatpush1.bf16.msra.mxu0 %v2129
    %2636 = vmatprep.subr.bf16.mxu0 %v2122
    %2637 = vmatpush1.bf16.msra.mxu0 %v2121
    %2638 = vmatprep.subr.bf16.mxu0 %v2114
    %2639 = vmatpush1.bf16.msra.mxu0 %v2113
    %2640 = vmatprep.subr.bf16.mxu0 %v2234
    %2641 = vmatpush2.bf16.msra.mxu0 %v2233
    %2642 = vmatprep.subr.bf16.mxu0 %v2226
    %2643 = vmatpush2.bf16.msra.mxu0 %v2225
    %2644 = vmatprep.subr.bf16.mxu0 %v2218
    %2645 = vmatpush2.bf16.msra.mxu0 %v2217
    %2646 = vmatprep.subr.bf16.mxu0 %v2210
    %2647 = vmatpush2.bf16.msra.mxu0 %v2209
    %2648 = vmatprep.subr.bf16.mxu0 %v2202
    %2649 = vmatpush2.bf16.msra.mxu0 %v2201
    %2650 = vmatprep.subr.bf16.mxu0 %v2194
    %2651 = vmatpush2.bf16.msra.mxu0 %v2193
    %2652 = vmatprep.subr.bf16.mxu0 %v2186
    %2653 = vmatpush2.bf16.msra.mxu0 %v2185
    %2654 = vmatprep.subr.bf16.mxu0 %v2178
    %2655 = vmatpush2.bf16.msra.mxu0 %v2177
    %2656 = vmatprep.mubr.bf16.mxu0 %v916
    %2657 = vmatmul.mubr.bf16.gmra.mxu0 %v915
    %v2658 = vpop.f32.mrf.mxu0
    %v2659 = vadd.f32 %v2616, %v2658
    %v2660 = vpop.f32.mrf.mxu0
    %v2661 = vadd.f32 %v2618, %v2660
    %v2662 = vpop.f32.mrf.mxu0
    %v2663 = vadd.f32 %v2620, %v2662
    %v2664 = vpop.f32.mrf.mxu0
    %v2665 = vadd.f32 %v2622, %v2664
    %2666 = vdwg.mxu0
    %2667 = vmatprep.subr.bf16.mxu0 %v2044
    %2668 = vmatpush1.bf16.msra.mxu0 %v2043
    %2669 = vmatprep.subr.bf16.mxu0 %v2036
    %2670 = vmatpush1.bf16.msra.mxu0 %v2035
    %2671 = vmatprep.subr.bf16.mxu0 %v2028
    %2672 = vmatpush1.bf16.msra.mxu0 %v2027
    %2673 = vmatprep.subr.bf16.mxu0 %v2020
    %2674 = vmatpush1.bf16.msra.mxu0 %v2019
    %2675 = vmatprep.subr.bf16.mxu0 %v2012
    %2676 = vmatpush1.bf16.msra.mxu0 %v2011
    %2677 = vmatprep.subr.bf16.mxu0 %v2004
    %2678 = vmatpush1.bf16.msra.mxu0 %v2003
    %2679 = vmatprep.subr.bf16.mxu0 %v1996
    %2680 = vmatpush1.bf16.msra.mxu0 %v1995
    %2681 = vmatprep.subr.bf16.mxu0 %v1988
    %2682 = vmatpush1.bf16.msra.mxu0 %v1987
    %2683 = vmatprep.subr.bf16.mxu0 %v2108
    %2684 = vmatpush2.bf16.msra.mxu0 %v2107
    %2685 = vmatprep.subr.bf16.mxu0 %v2100
    %2686 = vmatpush2.bf16.msra.mxu0 %v2099
    %2687 = vmatprep.subr.bf16.mxu0 %v2092
    %2688 = vmatpush2.bf16.msra.mxu0 %v2091
    %2689 = vmatprep.subr.bf16.mxu0 %v2084
    %2690 = vmatpush2.bf16.msra.mxu0 %v2083
    %2691 = vmatprep.subr.bf16.mxu0 %v2076
    %2692 = vmatpush2.bf16.msra.mxu0 %v2075
    %2693 = vmatprep.subr.bf16.mxu0 %v2068
    %2694 = vmatpush2.bf16.msra.mxu0 %v2067
    %2695 = vmatprep.subr.bf16.mxu0 %v2060
    %2696 = vmatpush2.bf16.msra.mxu0 %v2059
    %2697 = vmatprep.subr.bf16.mxu0 %v2052
    %2698 = vmatpush2.bf16.msra.mxu0 %v2051
    %2699 = vmatprep.mubr.bf16.mxu0 %v914
    %2700 = vmatmul.mubr.bf16.gmra.mxu0 %v913
    %v2701 = vpop.f32.mrf.mxu0
    %v2702 = vadd.f32 %v1194, %v2701
    %v2703 = vpop.f32.mrf.mxu0
    %v2704 = vadd.f32 %v1198, %v2703
    %v2705 = vpop.f32.mrf.mxu0
    %v2706 = vadd.f32 %v1194, %v2705
    %v2707 = vpop.f32.mrf.mxu0
    %v2708 = vadd.f32 %v1198, %v2707
    %2709 = vdwg.mxu0
    %2710 = vmatprep.subr.bf16.mxu0 %v2172
    %2711 = vmatpush1.bf16.msra.mxu0 %v2171
    %2712 = vmatprep.subr.bf16.mxu0 %v2164
    %2713 = vmatpush1.bf16.msra.mxu0 %v2163
    %2714 = vmatprep.subr.bf16.mxu0 %v2156
    %2715 = vmatpush1.bf16.msra.mxu0 %v2155
    %2716 = vmatprep.subr.bf16.mxu0 %v2148
    %2717 = vmatpush1.bf16.msra.mxu0 %v2147
    %2718 = vmatprep.subr.bf16.mxu0 %v2140
    %2719 = vmatpush1.bf16.msra.mxu0 %v2139
    %2720 = vmatprep.subr.bf16.mxu0 %v2132
    %2721 = vmatpush1.bf16.msra.mxu0 %v2131
    %2722 = vmatprep.subr.bf16.mxu0 %v2124
    %2723 = vmatpush1.bf16.msra.mxu0 %v2123
    %2724 = vmatprep.subr.bf16.mxu0 %v2116
    %2725 = vmatpush1.bf16.msra.mxu0 %v2115
    %2726 = vmatprep.subr.bf16.mxu0 %v2236
    %2727 = vmatpush2.bf16.msra.mxu0 %v2235
    %2728 = vmatprep.subr.bf16.mxu0 %v2228
    %2729 = vmatpush2.bf16.msra.mxu0 %v2227
    %2730 = vmatprep.subr.bf16.mxu0 %v2220
    %2731 = vmatpush2.bf16.msra.mxu0 %v2219
    %2732 = vmatprep.subr.bf16.mxu0 %v2212
    %2733 = vmatpush2.bf16.msra.mxu0 %v2211
    %2734 = vmatprep.subr.bf16.mxu0 %v2204
    %2735 = vmatpush2.bf16.msra.mxu0 %v2203
    %2736 = vmatprep.subr.bf16.mxu0 %v2196
    %2737 = vmatpush2.bf16.msra.mxu0 %v2195
    %2738 = vmatprep.subr.bf16.mxu0 %v2188
    %2739 = vmatpush2.bf16.msra.mxu0 %v2187
    %2740 = vmatprep.subr.bf16.mxu0 %v2180
    %2741 = vmatpush2.bf16.msra.mxu0 %v2179
    %2742 = vmatprep.mubr.bf16.mxu0 %v916
    %2743 = vmatmul.mubr.bf16.gmra.mxu0 %v915
    %v2744 = vpop.f32.mrf.mxu0
    %v2745 = vadd.f32 %v2702, %v2744
    %v2746 = vpop.f32.mrf.mxu0
    %v2747 = vadd.f32 %v2704, %v2746
    %v2748 = vpop.f32.mrf.mxu0
    %v2749 = vadd.f32 %v2706, %v2748
    %v2750 = vpop.f32.mrf.mxu0
    %v2751 = vadd.f32 %v2708, %v2750
    %2752 = vdwg.mxu0
    %2753 = vmatprep.subr.bf16.mxu0 %v2046
    %2754 = vmatpush1.bf16.msra.mxu0 %v2045
    %2755 = vmatprep.subr.bf16.mxu0 %v2038
    %2756 = vmatpush1.bf16.msra.mxu0 %v2037
    %2757 = vmatprep.subr.bf16.mxu0 %v2030
    %2758 = vmatpush1.bf16.msra.mxu0 %v2029
    %2759 = vmatprep.subr.bf16.mxu0 %v2022
    %2760 = vmatpush1.bf16.msra.mxu0 %v2021
    %2761 = vmatprep.subr.bf16.mxu0 %v2014
    %2762 = vmatpush1.bf16.msra.mxu0 %v2013
    %2763 = vmatprep.subr.bf16.mxu0 %v2006
    %2764 = vmatpush1.bf16.msra.mxu0 %v2005
    %2765 = vmatprep.subr.bf16.mxu0 %v1998
    %2766 = vmatpush1.bf16.msra.mxu0 %v1997
    %2767 = vmatprep.subr.bf16.mxu0 %v1990
    %2768 = vmatpush1.bf16.msra.mxu0 %v1989
    %2769 = vmatprep.subr.bf16.mxu0 %v2110
    %2770 = vmatpush2.bf16.msra.mxu0 %v2109
    %2771 = vmatprep.subr.bf16.mxu0 %v2102
    %2772 = vmatpush2.bf16.msra.mxu0 %v2101
    %2773 = vmatprep.subr.bf16.mxu0 %v2094
    %2774 = vmatpush2.bf16.msra.mxu0 %v2093
    %2775 = vmatprep.subr.bf16.mxu0 %v2086
    %2776 = vmatpush2.bf16.msra.mxu0 %v2085
    %2777 = vmatprep.subr.bf16.mxu0 %v2078
    %2778 = vmatpush2.bf16.msra.mxu0 %v2077
    %2779 = vmatprep.subr.bf16.mxu0 %v2070
    %2780 = vmatpush2.bf16.msra.mxu0 %v2069
    %2781 = vmatprep.subr.bf16.mxu0 %v2062
    %2782 = vmatpush2.bf16.msra.mxu0 %v2061
    %2783 = vmatprep.subr.bf16.mxu0 %v2054
    %2784 = vmatpush2.bf16.msra.mxu0 %v2053
    %2785 = vmatprep.mubr.bf16.mxu0 %v914
    %2786 = vmatmul.mubr.bf16.gmra.mxu0 %v913
    %v2787 = vpop.f32.mrf.mxu0
    %v2788 = vadd.f32 %v1202, %v2787
    %v2789 = vpop.f32.mrf.mxu0
    %v2790 = vadd.f32 %v1206, %v2789
    %v2791 = vpop.f32.mrf.mxu0
    %v2792 = vadd.f32 %v1202, %v2791
    %v2793 = vpop.f32.mrf.mxu0
    %v2794 = vadd.f32 %v1206, %v2793
    %2795 = vdwg.mxu0
    %2796 = vmatprep.subr.bf16.mxu0 %v2174
    %2797 = vmatpush1.bf16.msra.mxu0 %v2173
    %2798 = vmatprep.subr.bf16.mxu0 %v2166
    %2799 = vmatpush1.bf16.msra.mxu0 %v2165
    %2800 = vmatprep.subr.bf16.mxu0 %v2158
    %2801 = vmatpush1.bf16.msra.mxu0 %v2157
    %2802 = vmatprep.subr.bf16.mxu0 %v2150
    %2803 = vmatpush1.bf16.msra.mxu0 %v2149
    %2804 = vmatprep.subr.bf16.mxu0 %v2142
    %2805 = vmatpush1.bf16.msra.mxu0 %v2141
    %2806 = vmatprep.subr.bf16.mxu0 %v2134
    %2807 = vmatpush1.bf16.msra.mxu0 %v2133
    %2808 = vmatprep.subr.bf16.mxu0 %v2126
    %2809 = vmatpush1.bf16.msra.mxu0 %v2125
    %2810 = vmatprep.subr.bf16.mxu0 %v2118
    %2811 = vmatpush1.bf16.msra.mxu0 %v2117
    %2812 = vmatprep.subr.bf16.mxu0 %v2238
    %2813 = vmatpush2.bf16.msra.mxu0 %v2237
    %2814 = vmatprep.subr.bf16.mxu0 %v2230
    %2815 = vmatpush2.bf16.msra.mxu0 %v2229
    %2816 = vmatprep.subr.bf16.mxu0 %v2222
    %2817 = vmatpush2.bf16.msra.mxu0 %v2221
    %2818 = vmatprep.subr.bf16.mxu0 %v2214
    %2819 = vmatpush2.bf16.msra.mxu0 %v2213
    %2820 = vmatprep.subr.bf16.mxu0 %v2206
    %2821 = vmatpush2.bf16.msra.mxu0 %v2205
    %2822 = vmatprep.subr.bf16.mxu0 %v2198
    %2823 = vmatpush2.bf16.msra.mxu0 %v2197
    %2824 = vmatprep.subr.bf16.mxu0 %v2190
    %2825 = vmatpush2.bf16.msra.mxu0 %v2189
    %2826 = vmatprep.subr.bf16.mxu0 %v2182
    %2827 = vmatpush2.bf16.msra.mxu0 %v2181
    %2828 = vmatprep.mubr.bf16.mxu0 %v916
    %2829 = vmatmul.mubr.bf16.gmra.mxu0 %v915
    %v2830 = vpop.f32.mrf.mxu0
    %v2831 = vadd.f32 %v2788, %v2830
    %v2832 = vpop.f32.mrf.mxu0
    %v2833 = vadd.f32 %v2790, %v2832
    %v2834 = vpop.f32.mrf.mxu0
    %v2835 = vadd.f32 %v2792, %v2834
    %v2836 = vpop.f32.mrf.mxu0
    %v2837 = vadd.f32 %v2794, %v2836
    %2838 = vdwg.mxu0
    %v2839 = vmax.f32 %v2573, 0.0
    %v2840 = vmax.f32 %v2575, 0.0
    %v2841 = vmax.f32 %v2659, 0.0
    %v2842 = vmax.f32 %v2661, 0.0
    %v2843 = vmax.f32 %v2745, 0.0
    %v2844 = vmax.f32 %v2747, 0.0
    %v2845 = vmax.f32 %v2831, 0.0
    %v2846 = vmax.f32 %v2833, 0.0
    %v2847 = vmax.f32 %v2577, 0.0
    %v2848 = vmax.f32 %v2579, 0.0
    %v2849 = vmax.f32 %v2663, 0.0
    %v2850 = vmax.f32 %v2665, 0.0
    %v2851 = vmax.f32 %v2749, 0.0
    %v2852 = vmax.f32 %v2751, 0.0
    %v2853 = vmax.f32 %v2835, 0.0
    %v2854 = vmax.f32 %v2837, 0.0
    %v2855 = vpack.c.bf16 %v2847, %v2839
    %v2856 = vpack.c.bf16 %v2848, %v2840
    %v2857 = vpack.c.bf16 %v2849, %v2841
    %v2858 = vpack.c.bf16 %v2850, %v2842
    %v2859 = vpack.c.bf16 %v2851, %v2843
    %v2860 = vpack.c.bf16 %v2852, %v2844
    %v2861 = vpack.c.bf16 %v2853, %v2845
    %v2862 = vpack.c.bf16 %v2854, %v2846
    %v2863 = vld [vmem:[#allocation13] sm:$0xf]
    %v2864 = vld [vmem:[#allocation13 + $0x4] sm:$0xf]
    %v2865 = vld [vmem:[#allocation13 + $0x8] sm:$0xf]
    %v2866 = vld [vmem:[#allocation13 + $0xc] sm:$0xf]
    %v2867 = vld [vmem:[#allocation13 + $0x10] sm:$0xf]
    %v2868 = vld [vmem:[#allocation13 + $0x14] sm:$0xf]
    %v2869 = vld [vmem:[#allocation13 + $0x18] sm:$0xf]
    %v2870 = vld [vmem:[#allocation13 + $0x1c] sm:$0xf]
    %v2871 = vld [vmem:[#allocation13 + $0x20] sm:$0xf]
    %v2872 = vld [vmem:[#allocation13 + $0x24] sm:$0xf]
    %v2873 = vld [vmem:[#allocation13 + $0x28] sm:$0xf]
    %v2874 = vld [vmem:[#allocation13 + $0x2c] sm:$0xf]
    %v2875 = vld [vmem:[#allocation13 + $0x30] sm:$0xf]
    %v2876 = vld [vmem:[#allocation13 + $0x34] sm:$0xf]
    %v2877 = vld [vmem:[#allocation13 + $0x38] sm:$0xf]
    %v2878 = vld [vmem:[#allocation13 + $0x3c] sm:$0xf]
    %v2879 = vld [vmem:[#allocation13 + $0x40] sm:$0xf]
    %v2880 = vld [vmem:[#allocation13 + $0x44] sm:$0xf]
    %v2881 = vld [vmem:[#allocation13 + $0x48] sm:$0xf]
    %v2882 = vld [vmem:[#allocation13 + $0x4c] sm:$0xf]
    %v2883 = vld [vmem:[#allocation13 + $0x50] sm:$0xf]
    %v2884 = vld [vmem:[#allocation13 + $0x54] sm:$0xf]
    %v2885 = vld [vmem:[#allocation13 + $0x58] sm:$0xf]
    %v2886 = vld [vmem:[#allocation13 + $0x5c] sm:$0xf]
    %v2887 = vld [vmem:[#allocation13 + $0x60] sm:$0xf]
    %v2888 = vld [vmem:[#allocation13 + $0x64] sm:$0xf]
    %v2889 = vld [vmem:[#allocation13 + $0x68] sm:$0xf]
    %v2890 = vld [vmem:[#allocation13 + $0x6c] sm:$0xf]
    %v2891 = vld [vmem:[#allocation13 + $0x70] sm:$0xf]
    %v2892 = vld [vmem:[#allocation13 + $0x74] sm:$0xf]
    %v2893 = vld [vmem:[#allocation13 + $0x78] sm:$0xf]
    %v2894 = vld [vmem:[#allocation13 + $0x7c] sm:$0xf]
    %v2895 = vld [vmem:[#allocation13 + $0x80] sm:$0xf]
    %v2896 = vld [vmem:[#allocation13 + $0x84] sm:$0xf]
    %v2897 = vld [vmem:[#allocation13 + $0x88] sm:$0xf]
    %v2898 = vld [vmem:[#allocation13 + $0x8c] sm:$0xf]
    %v2899 = vld [vmem:[#allocation13 + $0x90] sm:$0xf]
    %v2900 = vld [vmem:[#allocation13 + $0x94] sm:$0xf]
    %v2901 = vld [vmem:[#allocation13 + $0x98] sm:$0xf]
    %v2902 = vld [vmem:[#allocation13 + $0x9c] sm:$0xf]
    %v2903 = vld [vmem:[#allocation13 + $0xa0] sm:$0xf]
    %v2904 = vld [vmem:[#allocation13 + $0xa4] sm:$0xf]
    %v2905 = vld [vmem:[#allocation13 + $0xa8] sm:$0xf]
    %v2906 = vld [vmem:[#allocation13 + $0xac] sm:$0xf]
    %v2907 = vld [vmem:[#allocation13 + $0xb0] sm:$0xf]
    %v2908 = vld [vmem:[#allocation13 + $0xb4] sm:$0xf]
    %v2909 = vld [vmem:[#allocation13 + $0xb8] sm:$0xf]
    %v2910 = vld [vmem:[#allocation13 + $0xbc] sm:$0xf]
    %v2911 = vld [vmem:[#allocation13 + $0xc0] sm:$0xf]
    %v2912 = vld [vmem:[#allocation13 + $0xc4] sm:$0xf]
    %v2913 = vld [vmem:[#allocation13 + $0xc8] sm:$0xf]
    %v2914 = vld [vmem:[#allocation13 + $0xcc] sm:$0xf]
    %v2915 = vld [vmem:[#allocation13 + $0xd0] sm:$0xf]
    %v2916 = vld [vmem:[#allocation13 + $0xd4] sm:$0xf]
    %v2917 = vld [vmem:[#allocation13 + $0xd8] sm:$0xf]
    %v2918 = vld [vmem:[#allocation13 + $0xdc] sm:$0xf]
    %v2919 = vld [vmem:[#allocation13 + $0xe0] sm:$0xf]
    %v2920 = vld [vmem:[#allocation13 + $0xe4] sm:$0xf]
    %v2921 = vld [vmem:[#allocation13 + $0xe8] sm:$0xf]
    %v2922 = vld [vmem:[#allocation13 + $0xec] sm:$0xf]
    %v2923 = vld [vmem:[#allocation13 + $0xf0] sm:$0xf]
    %v2924 = vld [vmem:[#allocation13 + $0xf4] sm:$0xf]
    %v2925 = vld [vmem:[#allocation13 + $0xf8] sm:$0xf]
    %v2926 = vld [vmem:[#allocation13 + $0xfc] sm:$0xf]
    %v2927 = vld [vmem:[#allocation13 + $0x100] sm:$0xf]
    %v2928 = vld [vmem:[#allocation13 + $0x104] sm:$0xf]
    %v2929 = vld [vmem:[#allocation13 + $0x108] sm:$0xf]
    %v2930 = vld [vmem:[#allocation13 + $0x10c] sm:$0xf]
    %v2931 = vld [vmem:[#allocation13 + $0x110] sm:$0xf]
    %v2932 = vld [vmem:[#allocation13 + $0x114] sm:$0xf]
    %v2933 = vld [vmem:[#allocation13 + $0x118] sm:$0xf]
    %v2934 = vld [vmem:[#allocation13 + $0x11c] sm:$0xf]
    %v2935 = vld [vmem:[#allocation13 + $0x120] sm:$0xf]
    %v2936 = vld [vmem:[#allocation13 + $0x124] sm:$0xf]
    %v2937 = vld [vmem:[#allocation13 + $0x128] sm:$0xf]
    %v2938 = vld [vmem:[#allocation13 + $0x12c] sm:$0xf]
    %v2939 = vld [vmem:[#allocation13 + $0x130] sm:$0xf]
    %v2940 = vld [vmem:[#allocation13 + $0x134] sm:$0xf]
    %v2941 = vld [vmem:[#allocation13 + $0x138] sm:$0xf]
    %v2942 = vld [vmem:[#allocation13 + $0x13c] sm:$0xf]
    %v2943 = vld [vmem:[#allocation13 + $0x140] sm:$0xf]
    %v2944 = vld [vmem:[#allocation13 + $0x144] sm:$0xf]
    %v2945 = vld [vmem:[#allocation13 + $0x148] sm:$0xf]
    %v2946 = vld [vmem:[#allocation13 + $0x14c] sm:$0xf]
    %v2947 = vld [vmem:[#allocation13 + $0x150] sm:$0xf]
    %v2948 = vld [vmem:[#allocation13 + $0x154] sm:$0xf]
    %v2949 = vld [vmem:[#allocation13 + $0x158] sm:$0xf]
    %v2950 = vld [vmem:[#allocation13 + $0x15c] sm:$0xf]
    %v2951 = vld [vmem:[#allocation13 + $0x160] sm:$0xf]
    %v2952 = vld [vmem:[#allocation13 + $0x164] sm:$0xf]
    %v2953 = vld [vmem:[#allocation13 + $0x168] sm:$0xf]
    %v2954 = vld [vmem:[#allocation13 + $0x16c] sm:$0xf]
    %v2955 = vld [vmem:[#allocation13 + $0x170] sm:$0xf]
    %v2956 = vld [vmem:[#allocation13 + $0x174] sm:$0xf]
    %v2957 = vld [vmem:[#allocation13 + $0x178] sm:$0xf]
    %v2958 = vld [vmem:[#allocation13 + $0x17c] sm:$0xf]
    %v2959 = vld [vmem:[#allocation13 + $0x180] sm:$0xf]
    %v2960 = vld [vmem:[#allocation13 + $0x184] sm:$0xf]
    %v2961 = vld [vmem:[#allocation13 + $0x188] sm:$0xf]
    %v2962 = vld [vmem:[#allocation13 + $0x18c] sm:$0xf]
    %v2963 = vld [vmem:[#allocation13 + $0x190] sm:$0xf]
    %v2964 = vld [vmem:[#allocation13 + $0x194] sm:$0xf]
    %v2965 = vld [vmem:[#allocation13 + $0x198] sm:$0xf]
    %v2966 = vld [vmem:[#allocation13 + $0x19c] sm:$0xf]
    %v2967 = vld [vmem:[#allocation13 + $0x1a0] sm:$0xf]
    %v2968 = vld [vmem:[#allocation13 + $0x1a4] sm:$0xf]
    %v2969 = vld [vmem:[#allocation13 + $0x1a8] sm:$0xf]
    %v2970 = vld [vmem:[#allocation13 + $0x1ac] sm:$0xf]
    %v2971 = vld [vmem:[#allocation13 + $0x1b0] sm:$0xf]
    %v2972 = vld [vmem:[#allocation13 + $0x1b4] sm:$0xf]
    %v2973 = vld [vmem:[#allocation13 + $0x1b8] sm:$0xf]
    %v2974 = vld [vmem:[#allocation13 + $0x1bc] sm:$0xf]
    %v2975 = vld [vmem:[#allocation13 + $0x1c0] sm:$0xf]
    %v2976 = vld [vmem:[#allocation13 + $0x1c4] sm:$0xf]
    %v2977 = vld [vmem:[#allocation13 + $0x1c8] sm:$0xf]
    %v2978 = vld [vmem:[#allocation13 + $0x1cc] sm:$0xf]
    %v2979 = vld [vmem:[#allocation13 + $0x1d0] sm:$0xf]
    %v2980 = vld [vmem:[#allocation13 + $0x1d4] sm:$0xf]
    %v2981 = vld [vmem:[#allocation13 + $0x1d8] sm:$0xf]
    %v2982 = vld [vmem:[#allocation13 + $0x1dc] sm:$0xf]
    %v2983 = vld [vmem:[#allocation13 + $0x1e0] sm:$0xf]
    %v2984 = vld [vmem:[#allocation13 + $0x1e4] sm:$0xf]
    %v2985 = vld [vmem:[#allocation13 + $0x1e8] sm:$0xf]
    %v2986 = vld [vmem:[#allocation13 + $0x1ec] sm:$0xf]
    %v2987 = vld [vmem:[#allocation13 + $0x1f0] sm:$0xf]
    %v2988 = vld [vmem:[#allocation13 + $0x1f4] sm:$0xf]
    %v2989 = vld [vmem:[#allocation13 + $0x1f8] sm:$0xf]
    %v2990 = vld [vmem:[#allocation13 + $0x1fc] sm:$0xf]
    %v2991 = vld [vmem:[%s10] sm:$0x1]
    %v2993 = vlaneseq
    %v2994 = vshrl.u32 %v2993, 7
    %v2995 = vsub.s32 0, %v2994
    %v2996 = vrot.slane %v2991, %v2995
    %v3126 = vunpack.c.l.b16 %v2863
    %v3127 = vunpack.c.l.b16 %v2864
    %v3128 = vunpack.c.l.b16 %v2865
    %v3129 = vunpack.c.l.b16 %v2866
    %v3130 = vunpack.c.l.b16 %v2867
    %v3131 = vunpack.c.l.b16 %v2868
    %v3132 = vunpack.c.l.b16 %v2869
    %v3133 = vunpack.c.l.b16 %v2870
    %v3134 = vunpack.c.l.b16 %v2871
    %v3135 = vunpack.c.l.b16 %v2872
    %v3136 = vunpack.c.l.b16 %v2873
    %v3137 = vunpack.c.l.b16 %v2874
    %v3138 = vunpack.c.l.b16 %v2875
    %v3139 = vunpack.c.l.b16 %v2876
    %v3140 = vunpack.c.l.b16 %v2877
    %v3141 = vunpack.c.l.b16 %v2878
    %v3142 = vunpack.c.l.b16 %v2879
    %v3143 = vunpack.c.l.b16 %v2880
    %v3144 = vunpack.c.l.b16 %v2881
    %v3145 = vunpack.c.l.b16 %v2882
    %v3146 = vunpack.c.l.b16 %v2883
    %v3147 = vunpack.c.l.b16 %v2884
    %v3148 = vunpack.c.l.b16 %v2885
    %v3149 = vunpack.c.l.b16 %v2886
    %v3150 = vunpack.c.l.b16 %v2887
    %v3151 = vunpack.c.l.b16 %v2888
    %v3152 = vunpack.c.l.b16 %v2889
    %v3153 = vunpack.c.l.b16 %v2890
    %v3154 = vunpack.c.l.b16 %v2891
    %v3155 = vunpack.c.l.b16 %v2892
    %v3156 = vunpack.c.l.b16 %v2893
    %v3157 = vunpack.c.l.b16 %v2894
    %v3158 = vunpack.c.l.b16 %v2895
    %v3159 = vunpack.c.l.b16 %v2896
    %v3160 = vunpack.c.l.b16 %v2897
    %v3161 = vunpack.c.l.b16 %v2898
    %v3162 = vunpack.c.l.b16 %v2899
    %v3163 = vunpack.c.l.b16 %v2900
    %v3164 = vunpack.c.l.b16 %v2901
    %v3165 = vunpack.c.l.b16 %v2902
    %v3166 = vunpack.c.l.b16 %v2903
    %v3167 = vunpack.c.l.b16 %v2904
    %v3168 = vunpack.c.l.b16 %v2905
    %v3169 = vunpack.c.l.b16 %v2906
    %v3170 = vunpack.c.l.b16 %v2907
    %v3171 = vunpack.c.l.b16 %v2908
    %v3172 = vunpack.c.l.b16 %v2909
    %v3173 = vunpack.c.l.b16 %v2910
    %v3174 = vunpack.c.l.b16 %v2911
    %v3175 = vunpack.c.l.b16 %v2912
    %v3176 = vunpack.c.l.b16 %v2913
    %v3177 = vunpack.c.l.b16 %v2914
    %v3178 = vunpack.c.l.b16 %v2915
    %v3179 = vunpack.c.l.b16 %v2916
    %v3180 = vunpack.c.l.b16 %v2917
    %v3181 = vunpack.c.l.b16 %v2918
    %v3182 = vunpack.c.l.b16 %v2919
    %v3183 = vunpack.c.l.b16 %v2920
    %v3184 = vunpack.c.l.b16 %v2921
    %v3185 = vunpack.c.l.b16 %v2922
    %v3186 = vunpack.c.l.b16 %v2923
    %v3187 = vunpack.c.l.b16 %v2924
    %v3188 = vunpack.c.l.b16 %v2925
    %v3189 = vunpack.c.l.b16 %v2926
    %v3190 = vunpack.c.l.b16 %v2927
    %v3191 = vunpack.c.l.b16 %v2928
    %v3192 = vunpack.c.l.b16 %v2929
    %v3193 = vunpack.c.l.b16 %v2930
    %v3194 = vunpack.c.l.b16 %v2931
    %v3195 = vunpack.c.l.b16 %v2932
    %v3196 = vunpack.c.l.b16 %v2933
    %v3197 = vunpack.c.l.b16 %v2934
    %v3198 = vunpack.c.l.b16 %v2935
    %v3199 = vunpack.c.l.b16 %v2936
    %v3200 = vunpack.c.l.b16 %v2937
    %v3201 = vunpack.c.l.b16 %v2938
    %v3202 = vunpack.c.l.b16 %v2939
    %v3203 = vunpack.c.l.b16 %v2940
    %v3204 = vunpack.c.l.b16 %v2941
    %v3205 = vunpack.c.l.b16 %v2942
    %v3206 = vunpack.c.l.b16 %v2943
    %v3207 = vunpack.c.l.b16 %v2944
    %v3208 = vunpack.c.l.b16 %v2945
    %v3209 = vunpack.c.l.b16 %v2946
    %v3210 = vunpack.c.l.b16 %v2947
    %v3211 = vunpack.c.l.b16 %v2948
    %v3212 = vunpack.c.l.b16 %v2949
    %v3213 = vunpack.c.l.b16 %v2950
    %v3214 = vunpack.c.l.b16 %v2951
    %v3215 = vunpack.c.l.b16 %v2952
    %v3216 = vunpack.c.l.b16 %v2953
    %v3217 = vunpack.c.l.b16 %v2954
    %v3218 = vunpack.c.l.b16 %v2955
    %v3219 = vunpack.c.l.b16 %v2956
    %v3220 = vunpack.c.l.b16 %v2957
    %v3221 = vunpack.c.l.b16 %v2958
    %v3222 = vunpack.c.l.b16 %v2959
    %v3223 = vunpack.c.l.b16 %v2960
    %v3224 = vunpack.c.l.b16 %v2961
    %v3225 = vunpack.c.l.b16 %v2962
    %v3226 = vunpack.c.l.b16 %v2963
    %v3227 = vunpack.c.l.b16 %v2964
    %v3228 = vunpack.c.l.b16 %v2965
    %v3229 = vunpack.c.l.b16 %v2966
    %v3230 = vunpack.c.l.b16 %v2967
    %v3231 = vunpack.c.l.b16 %v2968
    %v3232 = vunpack.c.l.b16 %v2969
    %v3233 = vunpack.c.l.b16 %v2970
    %v3234 = vunpack.c.l.b16 %v2971
    %v3235 = vunpack.c.l.b16 %v2972
    %v3236 = vunpack.c.l.b16 %v2973
    %v3237 = vunpack.c.l.b16 %v2974
    %v3238 = vunpack.c.l.b16 %v2975
    %v3239 = vunpack.c.l.b16 %v2976
    %v3240 = vunpack.c.l.b16 %v2977
    %v3241 = vunpack.c.l.b16 %v2978
    %v3242 = vunpack.c.l.b16 %v2979
    %v3243 = vunpack.c.l.b16 %v2980
    %v3244 = vunpack.c.l.b16 %v2981
    %v3245 = vunpack.c.l.b16 %v2982
    %v3246 = vunpack.c.l.b16 %v2983
    %v3247 = vunpack.c.l.b16 %v2984
    %v3248 = vunpack.c.l.b16 %v2985
    %v3249 = vunpack.c.l.b16 %v2986
    %v3250 = vunpack.c.l.b16 %v2987
    %v3251 = vunpack.c.l.b16 %v2988
    %v3252 = vunpack.c.l.b16 %v2989
    %v3253 = vunpack.c.l.b16 %v2990
    %v3254 = vpack.c.b16 %v3127, %v3126
    %v3255 = vpack.c.b16 %v3129, %v3128
    %v3256 = vpack.c.b16 %v3131, %v3130
    %v3257 = vpack.c.b16 %v3133, %v3132
    %v3258 = vpack.c.b16 %v3135, %v3134
    %v3259 = vpack.c.b16 %v3137, %v3136
    %v3260 = vpack.c.b16 %v3139, %v3138
    %v3261 = vpack.c.b16 %v3141, %v3140
    %v3262 = vpack.c.b16 %v3143, %v3142
    %v3263 = vpack.c.b16 %v3145, %v3144
    %v3264 = vpack.c.b16 %v3147, %v3146
    %v3265 = vpack.c.b16 %v3149, %v3148
    %v3266 = vpack.c.b16 %v3151, %v3150
    %v3267 = vpack.c.b16 %v3153, %v3152
    %v3268 = vpack.c.b16 %v3155, %v3154
    %v3269 = vpack.c.b16 %v3157, %v3156
    %v3270 = vpack.c.b16 %v3159, %v3158
    %v3271 = vpack.c.b16 %v3161, %v3160
    %v3272 = vpack.c.b16 %v3163, %v3162
    %v3273 = vpack.c.b16 %v3165, %v3164
    %v3274 = vpack.c.b16 %v3167, %v3166
    %v3275 = vpack.c.b16 %v3169, %v3168
    %v3276 = vpack.c.b16 %v3171, %v3170
    %v3277 = vpack.c.b16 %v3173, %v3172
    %v3278 = vpack.c.b16 %v3175, %v3174
    %v3279 = vpack.c.b16 %v3177, %v3176
    %v3280 = vpack.c.b16 %v3179, %v3178
    %v3281 = vpack.c.b16 %v3181, %v3180
    %v3282 = vpack.c.b16 %v3183, %v3182
    %v3283 = vpack.c.b16 %v3185, %v3184
    %v3284 = vpack.c.b16 %v3187, %v3186
    %v3285 = vpack.c.b16 %v3189, %v3188
    %v3286 = vpack.c.b16 %v3191, %v3190
    %v3287 = vpack.c.b16 %v3193, %v3192
    %v3288 = vpack.c.b16 %v3195, %v3194
    %v3289 = vpack.c.b16 %v3197, %v3196
    %v3290 = vpack.c.b16 %v3199, %v3198
    %v3291 = vpack.c.b16 %v3201, %v3200
    %v3292 = vpack.c.b16 %v3203, %v3202
    %v3293 = vpack.c.b16 %v3205, %v3204
    %v3294 = vpack.c.b16 %v3207, %v3206
    %v3295 = vpack.c.b16 %v3209, %v3208
    %v3296 = vpack.c.b16 %v3211, %v3210
    %v3297 = vpack.c.b16 %v3213, %v3212
    %v3298 = vpack.c.b16 %v3215, %v3214
    %v3299 = vpack.c.b16 %v3217, %v3216
    %v3300 = vpack.c.b16 %v3219, %v3218
    %v3301 = vpack.c.b16 %v3221, %v3220
    %v3302 = vpack.c.b16 %v3223, %v3222
    %v3303 = vpack.c.b16 %v3225, %v3224
    %v3304 = vpack.c.b16 %v3227, %v3226
    %v3305 = vpack.c.b16 %v3229, %v3228
    %v3306 = vpack.c.b16 %v3231, %v3230
    %v3307 = vpack.c.b16 %v3233, %v3232
    %v3308 = vpack.c.b16 %v3235, %v3234
    %v3309 = vpack.c.b16 %v3237, %v3236
    %v3310 = vpack.c.b16 %v3239, %v3238
    %v3311 = vpack.c.b16 %v3241, %v3240
    %v3312 = vpack.c.b16 %v3243, %v3242
    %v3313 = vpack.c.b16 %v3245, %v3244
    %v3314 = vpack.c.b16 %v3247, %v3246
    %v3315 = vpack.c.b16 %v3249, %v3248
    %v3316 = vpack.c.b16 %v3251, %v3250
    %v3317 = vpack.c.b16 %v3253, %v3252
    %3382 = vmatprep.subr.bf16.mxu0 0
    %3383 = vmatpush1.bf16.msra.mxu0 %v3261
    %3384 = vmatprep.subr.bf16.mxu0 0
    %3385 = vmatpush1.bf16.msra.mxu0 %v3260
    %3386 = vmatprep.subr.bf16.mxu0 0
    %3387 = vmatpush1.bf16.msra.mxu0 %v3259
    %3388 = vmatprep.subr.bf16.mxu0 0
    %3389 = vmatpush1.bf16.msra.mxu0 %v3258
    %3390 = vmatprep.subr.bf16.mxu0 0
    %3391 = vmatpush1.bf16.msra.mxu0 %v3257
    %3392 = vmatprep.subr.bf16.mxu0 0
    %3393 = vmatpush1.bf16.msra.mxu0 %v3256
    %3394 = vmatprep.subr.bf16.mxu0 0
    %3395 = vmatpush1.bf16.msra.mxu0 %v3255
    %3396 = vmatprep.subr.bf16.mxu0 0
    %3397 = vmatpush1.bf16.msra.mxu0 %v3254
    %3398 = vmatprep.subr.bf16.mxu0 0
    %3399 = vmatpush2.bf16.msra.mxu0 %v3269
    %3400 = vmatprep.subr.bf16.mxu0 0
    %3401 = vmatpush2.bf16.msra.mxu0 %v3268
    %3402 = vmatprep.subr.bf16.mxu0 0
    %3403 = vmatpush2.bf16.msra.mxu0 %v3267
    %3404 = vmatprep.subr.bf16.mxu0 0
    %3405 = vmatpush2.bf16.msra.mxu0 %v3266
    %3406 = vmatprep.subr.bf16.mxu0 0
    %3407 = vmatpush2.bf16.msra.mxu0 %v3265
    %3408 = vmatprep.subr.bf16.mxu0 0
    %3409 = vmatpush2.bf16.msra.mxu0 %v3264
    %3410 = vmatprep.subr.bf16.mxu0 0
    %3411 = vmatpush2.bf16.msra.mxu0 %v3263
    %3412 = vmatprep.subr.bf16.mxu0 0
    %3413 = vmatpush2.bf16.msra.mxu0 %v3262
    %3414 = vmatprep.mubr.bf16.mxu0 %v2856
    %3415 = vmatmul.mubr.bf16.gmra.mxu0 %v2855
    %v3416 = vpop.f32.mrf.mxu0
    %v3417 = vadd.f32 %v2996, %v3416
    %v3418 = vpop.f32.mrf.mxu0
    %v3419 = vpop.f32.mrf.mxu0
    %v3420 = vadd.f32 %v2996, %v3419
    %v3421 = vpop.f32.mrf.mxu0
    %3422 = vdwg.mxu0
    %3423 = vmatprep.subr.bf16.mxu0 0
    %3424 = vmatpush1.bf16.msra.mxu0 %v3277
    %3425 = vmatprep.subr.bf16.mxu0 0
    %3426 = vmatpush1.bf16.msra.mxu0 %v3276
    %3427 = vmatprep.subr.bf16.mxu0 0
    %3428 = vmatpush1.bf16.msra.mxu0 %v3275
    %3429 = vmatprep.subr.bf16.mxu0 0
    %3430 = vmatpush1.bf16.msra.mxu0 %v3274
    %3431 = vmatprep.subr.bf16.mxu0 0
    %3432 = vmatpush1.bf16.msra.mxu0 %v3273
    %3433 = vmatprep.subr.bf16.mxu0 0
    %3434 = vmatpush1.bf16.msra.mxu0 %v3272
    %3435 = vmatprep.subr.bf16.mxu0 0
    %3436 = vmatpush1.bf16.msra.mxu0 %v3271
    %3437 = vmatprep.subr.bf16.mxu0 0
    %3438 = vmatpush1.bf16.msra.mxu0 %v3270
    %3439 = vmatprep.subr.bf16.mxu0 0
    %3440 = vmatpush2.bf16.msra.mxu0 %v3285
    %3441 = vmatprep.subr.bf16.mxu0 0
    %3442 = vmatpush2.bf16.msra.mxu0 %v3284
    %3443 = vmatprep.subr.bf16.mxu0 0
    %3444 = vmatpush2.bf16.msra.mxu0 %v3283
    %3445 = vmatprep.subr.bf16.mxu0 0
    %3446 = vmatpush2.bf16.msra.mxu0 %v3282
    %3447 = vmatprep.subr.bf16.mxu0 0
    %3448 = vmatpush2.bf16.msra.mxu0 %v3281
    %3449 = vmatprep.subr.bf16.mxu0 0
    %3450 = vmatpush2.bf16.msra.mxu0 %v3280
    %3451 = vmatprep.subr.bf16.mxu0 0
    %3452 = vmatpush2.bf16.msra.mxu0 %v3279
    %3453 = vmatprep.subr.bf16.mxu0 0
    %3454 = vmatpush2.bf16.msra.mxu0 %v3278
    %3455 = vmatprep.mubr.bf16.mxu0 %v2858
    %3456 = vmatmul.mubr.bf16.gmra.mxu0 %v2857
    %v3457 = vpop.f32.mrf.mxu0
    %v3458 = vadd.f32 %v3417, %v3457
    %v3459 = vpop.f32.mrf.mxu0
    %v3460 = vpop.f32.mrf.mxu0
    %v3461 = vadd.f32 %v3420, %v3460
    %v3462 = vpop.f32.mrf.mxu0
    %3463 = vdwg.mxu0
    %3464 = vmatprep.subr.bf16.mxu0 0
    %3465 = vmatpush1.bf16.msra.mxu0 %v3293
    %3466 = vmatprep.subr.bf16.mxu0 0
    %3467 = vmatpush1.bf16.msra.mxu0 %v3292
    %3468 = vmatprep.subr.bf16.mxu0 0
    %3469 = vmatpush1.bf16.msra.mxu0 %v3291
    %3470 = vmatprep.subr.bf16.mxu0 0
    %3471 = vmatpush1.bf16.msra.mxu0 %v3290
    %3472 = vmatprep.subr.bf16.mxu0 0
    %3473 = vmatpush1.bf16.msra.mxu0 %v3289
    %3474 = vmatprep.subr.bf16.mxu0 0
    %3475 = vmatpush1.bf16.msra.mxu0 %v3288
    %3476 = vmatprep.subr.bf16.mxu0 0
    %3477 = vmatpush1.bf16.msra.mxu0 %v3287
    %3478 = vmatprep.subr.bf16.mxu0 0
    %3479 = vmatpush1.bf16.msra.mxu0 %v3286
    %3480 = vmatprep.subr.bf16.mxu0 0
    %3481 = vmatpush2.bf16.msra.mxu0 %v3301
    %3482 = vmatprep.subr.bf16.mxu0 0
    %3483 = vmatpush2.bf16.msra.mxu0 %v3300
    %3484 = vmatprep.subr.bf16.mxu0 0
    %3485 = vmatpush2.bf16.msra.mxu0 %v3299
    %3486 = vmatprep.subr.bf16.mxu0 0
    %3487 = vmatpush2.bf16.msra.mxu0 %v3298
    %3488 = vmatprep.subr.bf16.mxu0 0
    %3489 = vmatpush2.bf16.msra.mxu0 %v3297
    %3490 = vmatprep.subr.bf16.mxu0 0
    %3491 = vmatpush2.bf16.msra.mxu0 %v3296
    %3492 = vmatprep.subr.bf16.mxu0 0
    %3493 = vmatpush2.bf16.msra.mxu0 %v3295
    %3494 = vmatprep.subr.bf16.mxu0 0
    %3495 = vmatpush2.bf16.msra.mxu0 %v3294
    %3496 = vmatprep.mubr.bf16.mxu0 %v2860
    %3497 = vmatmul.mubr.bf16.gmra.mxu0 %v2859
    %v3498 = vpop.f32.mrf.mxu0
    %v3499 = vadd.f32 %v3458, %v3498
    %v3500 = vpop.f32.mrf.mxu0
    %v3501 = vpop.f32.mrf.mxu0
    %v3502 = vadd.f32 %v3461, %v3501
    %v3503 = vpop.f32.mrf.mxu0
    %3504 = vdwg.mxu0
    %3505 = vmatprep.subr.bf16.mxu0 0
    %3506 = vmatpush1.bf16.msra.mxu0 %v3309
    %3507 = vmatprep.subr.bf16.mxu0 0
    %3508 = vmatpush1.bf16.msra.mxu0 %v3308
    %3509 = vmatprep.subr.bf16.mxu0 0
    %3510 = vmatpush1.bf16.msra.mxu0 %v3307
    %3511 = vmatprep.subr.bf16.mxu0 0
    %3512 = vmatpush1.bf16.msra.mxu0 %v3306
    %3513 = vmatprep.subr.bf16.mxu0 0
    %3514 = vmatpush1.bf16.msra.mxu0 %v3305
    %3515 = vmatprep.subr.bf16.mxu0 0
    %3516 = vmatpush1.bf16.msra.mxu0 %v3304
    %3517 = vmatprep.subr.bf16.mxu0 0
    %3518 = vmatpush1.bf16.msra.mxu0 %v3303
    %3519 = vmatprep.subr.bf16.mxu0 0
    %3520 = vmatpush1.bf16.msra.mxu0 %v3302
    %3521 = vmatprep.subr.bf16.mxu0 0
    %3522 = vmatpush2.bf16.msra.mxu0 %v3317
    %3523 = vmatprep.subr.bf16.mxu0 0
    %3524 = vmatpush2.bf16.msra.mxu0 %v3316
    %3525 = vmatprep.subr.bf16.mxu0 0
    %3526 = vmatpush2.bf16.msra.mxu0 %v3315
    %3527 = vmatprep.subr.bf16.mxu0 0
    %3528 = vmatpush2.bf16.msra.mxu0 %v3314
    %3529 = vmatprep.subr.bf16.mxu0 0
    %3530 = vmatpush2.bf16.msra.mxu0 %v3313
    %3531 = vmatprep.subr.bf16.mxu0 0
    %3532 = vmatpush2.bf16.msra.mxu0 %v3312
    %3533 = vmatprep.subr.bf16.mxu0 0
    %3534 = vmatpush2.bf16.msra.mxu0 %v3311
    %3535 = vmatprep.subr.bf16.mxu0 0
    %3536 = vmatpush2.bf16.msra.mxu0 %v3310
    %3537 = vmatprep.mubr.bf16.mxu0 %v2862
    %3538 = vmatmul.mubr.bf16.gmra.mxu0 %v2861
    %v3539 = vpop.f32.mrf.mxu0
    %v3540 = vadd.f32 %v3499, %v3539
    %v3541 = vpop.f32.mrf.mxu0
    %v3542 = vpop.f32.mrf.mxu0
    %v3543 = vadd.f32 %v3502, %v3542
    %v3544 = vpop.f32.mrf.mxu0
    %3545 = vdwg.mxu0
    %v3546 = vtanh.pop %v3540
    %v3547 = vtanh.pop %v3543
    %3548 = vst [vmem:[#allocation14] sm:$0xff] %v3546
    %3549 = vst [vmem:[#allocation14 + $0x8] sm:$0xff] %v3547
    // Predicated region
    $region74: #{tpu_custom_call.1} parent=1 // pred_check
      _
    $region75: #{tpu_custom_call.1} parent=1 // pred_check_branch
      %3551 = sbr.rel (0) target = $region77
    $region76: #{tpu_custom_call.1} parent=1 // pred_region
      %s3553 = ssub.s32 256, 256
      %3554 = vsyncadd [#allocation4], %s3553
      %s3555 = sshll.u32 [#allocation14], 4
      %s3556 = int_to_ptr.vmem [resolvable:$true] %s3555
      %3561 = dma.vmem_to_hbm [thread:$0]  %s3556, 256, %s11, [#allocation4], 128, 128, 8
    $region77: #{tpu_custom_call.1} parent=1 // pred_fallthru
      _
    // Predicated region
    $region78: #{tpu_custom_call.1} parent=1 // pred_check
      _
    $region79: #{tpu_custom_call.1} parent=1 // pred_check_branch
      %3563 = sbr.rel (0) target = $region81
    $region80: #{tpu_custom_call.1} parent=1 // pred_region
      %3564 = dma.done [#allocation4], 256
    $region81: #{tpu_custom_call.1} parent=1 // pred_fallthru
      _
    %3565 = vsyncpa [#allocation3], 1
    %3566 = vsyncpa [#allocation6], 1
    %3567 = vsyncpa [#allocation9], 1
    %3568 = vsyncpa [#allocation12], 1
    %3569 = vsyncpa [#allocation4], 1

</llo_original>
